<compile_context>
chip_gen: v6e
topology: v6e:2x2x1
jax: 0.10.0
libtpu: 0.0.40
codegen_flags: <defaults>
</compile_context>

<pallas_src>
import jax
import jax.numpy as jnp
from jax.experimental import pallas as pl
from jax.experimental.pallas import tpu as pltpu


# ----------------------------------------------------------------------------
# Fused kernel: x, (w0, b0, ..., w_{L-1}, b_{L-1}), w_last  ->  L2-normalized out
# ----------------------------------------------------------------------------
def _make_fused_textnn_kernel(num_hidden):
    def kernel(*refs):
        x_ref = refs[0]
        hidden_refs = refs[1:1 + 2 * num_hidden]
        w_last_ref = refs[1 + 2 * num_hidden]
        o_ref = refs[2 + 2 * num_hidden]

        h = x_ref[...]                                   # bf16 activations
        # Statically unrolled layer loop; activations live in VMEM/vregs only.
        for l in range(num_hidden):
            w_ref = hidden_refs[2 * l]
            b_ref = hidden_refs[2 * l + 1]
            acc = jnp.dot(h, w_ref[...], preferred_element_type=jnp.float32)
            acc = jnp.maximum(acc + b_ref[...], 0.0)     # f32 bias + ReLU
            h = acc.astype(jnp.bfloat16)                 # bf16 operand for next MXU pass
        y = jnp.dot(h, w_last_ref[...], preferred_element_type=jnp.float32)
        # L2 row-normalization: rsqrt (EUP slot) + multiply; padded columns of
        # y are exactly zero so they do not perturb the norm.
        inv_norm = jax.lax.rsqrt(jnp.sum(y * y, axis=1, keepdims=True) + 1e-12)
        o_ref[...] = (y * inv_norm).astype(o_ref.dtype)

    return kernel


# ----------------------------------------------------------------------------
# Batch-tile picker: VMEM-budgeted, megacore-friendly (>= 2 programs if possible)
# ----------------------------------------------------------------------------
def _pick_batch_tile(batch, per_row_bytes, const_bytes, vmem_budget_bytes):
    padded8 = ((batch + 7) // 8) * 8
    for bm in (512, 256, 128, 64, 32, 16, 8):
        if bm > padded8:
            continue
        # Prefer >= 2 grid programs (v7x has 2 TensorCores) when batch spans
        # more than one minimal tile.
        if padded8 > 8 and bm > 8 and pl.cdiv(padded8, bm) < 2:
            continue
        if const_bytes + bm * per_row_bytes <= vmem_budget_bytes:
            return bm
    return 8


def _build_pallas_call(num_hidden, bm, grid_n, in_dim, out_pad,
                       weight_shapes, bias_shapes, w_last_shape,
                       cost, vmem_limit, single_buffer_consts):
    def const_spec(shape):
        # Same block every grid step -> stays VMEM-resident; single-buffer it.
        if single_buffer_consts:
            return pl.BlockSpec(shape, lambda i: (0, 0),
                                pipeline_mode=pl.Buffered(1))
        return pl.BlockSpec(shape, lambda i: (0, 0))

    in_specs = [pl.BlockSpec((bm, in_dim), lambda i: (i, 0))]
    for ws, bs in zip(weight_shapes, bias_shapes):
        in_specs.append(const_spec(ws))
        in_specs.append(const_spec(bs))
    in_specs.append(const_spec(w_last_shape))

    return pl.pallas_call(
        _make_fused_textnn_kernel(num_hidden),
        out_shape=jax.ShapeDtypeStruct((grid_n * bm, out_pad), jnp.float32),
        grid=(grid_n,),
        in_specs=in_specs,
        out_specs=pl.BlockSpec((bm, out_pad), lambda i: (i, 0)),
        compiler_params=pltpu.CompilerParams(
            dimension_semantics=("parallel",),
            vmem_limit_bytes=vmem_limit),
        cost_estimate=cost,
    )


# ----------------------------------------------------------------------------
# Wrapper
# ----------------------------------------------------------------------------
def textnn_forward(x, params):
    weights, biases, w_last = params
    batch, in_dim = x.shape
    mid = weights[0].shape[1]
    out_dim = w_last.shape[1]
    num_hidden = len(weights)

    # bf16 MXU operands; biases stay f32 (added to the f32 accumulator).
    x_bf = x.astype(jnp.bfloat16)
    w_bf = [w.astype(jnp.bfloat16) for w in weights]
    b_f32 = [b.astype(jnp.float32) for b in biases]

    # Lane-dense output: pad out_dim up to a multiple of 128 with zero columns.
    out_pad = max(128, ((out_dim + 127) // 128) * 128)
    w_last_bf = jnp.zeros((mid, out_pad), jnp.bfloat16)
    w_last_bf = w_last_bf.at[:, :out_dim].set(w_last.astype(jnp.bfloat16))

    # VMEM budgeting (single-buffered consts, double-buffered x/out tiles).
    const_bytes = sum(w.size * 2 for w in w_bf) + mid * out_pad * 2
    const_bytes += sum(b.size * 4 for b in b_f32)
    per_row_bytes = (2 * in_dim * 2        # x tile, double-buffered bf16
                     + 2 * out_pad * 4     # out tile, double-buffered f32
                     + mid * 6             # f32 + bf16 activation copies
                     + out_pad * 4)        # y (f32) before normalization
    vmem_budget = 40 * 1024 * 1024
    vmem_limit = 48 * 1024 * 1024          # > scoped defaults, < v7x 64 MiB physical

    bm = _pick_batch_tile(batch, per_row_bytes, const_bytes, vmem_budget)
    grid_n = pl.cdiv(batch, bm)
    padded_batch = grid_n * bm
    if padded_batch != batch:
        x_bf = jnp.pad(x_bf, ((0, padded_batch - batch), (0, 0)))

    flops = 2 * padded_batch * (in_dim * mid
                                + (num_hidden - 1) * mid * mid
                                + mid * out_pad)
    bytes_accessed = (padded_batch * in_dim * 2
                      + const_bytes
                      + padded_batch * out_pad * 4)
    cost = pl.CostEstimate(flops=int(flops),
                           transcendentals=int(padded_batch),
                           bytes_accessed=int(bytes_accessed))

    args = [x_bf]
    for w, b in zip(w_bf, b_f32):
        args += [w, b]
    args.append(w_last_bf)

    weight_shapes = [w.shape for w in w_bf]
    bias_shapes = [b.shape for b in b_f32]

    try:
        call = _build_pallas_call(num_hidden, bm, grid_n, in_dim, out_pad,
                                  weight_shapes, bias_shapes, w_last_bf.shape,
                                  cost, vmem_limit, single_buffer_consts=True)
        out_padded = call(*args)
    except Exception:
        # Fallback: identical kernel with default (double-buffered) const specs.
        call = _build_pallas_call(num_hidden, bm, grid_n, in_dim, out_pad,
                                  weight_shapes, bias_shapes, w_last_bf.shape,
                                  cost, vmem_limit, single_buffer_consts=False)
        out_padded = call(*args)

    return out_padded[:batch, :out_dim]


# ----------------------------------------------------------------------------
# Parameter construction (deterministic, synthetic)
# ----------------------------------------------------------------------------
def make_textnn_params(key, input_dim, output_dim, mid_num, layer_num):
    """Matches TextNN: Linear(in,mid), (layer_num-1) x Linear(mid,mid),
    Linear(mid,out, bias=False)."""
    dims = [input_dim] + [mid_num] * layer_num
    weights, biases = [], []
    for i in range(layer_num):
        key, k1, k2 = jax.random.split(key, 3)
        weights.append(0.05 * jax.random.normal(k1, (dims[i], dims[i + 1]), jnp.float32))
        biases.append(0.05 * jax.random.normal(k2, (1, dims[i + 1]), jnp.float32))
    key, k3 = jax.random.split(key)
    w_last = 0.05 * jax.random.normal(k3, (mid_num, output_dim), jnp.float32)
    return weights, biases, w_last


# Pure-JAX reference using the SAME bf16-operand / f32-accumulate math.
def textnn_reference_bf16(x, params):
    weights, biases, w_last = params
    h = x.astype(jnp.bfloat16)
    for w, b in zip(weights, biases):
        acc = jnp.dot(h, w.astype(jnp.bfloat16), preferred_element_type=jnp.float32)
        h = jnp.maximum(acc + b.astype(jnp.float32), 0.0).astype(jnp.bfloat16)
    y = jnp.dot(h, w_last.astype(jnp.bfloat16), preferred_element_type=jnp.float32)
    norm = jnp.sqrt(jnp.sum(y * y, axis=1, keepdims=True) + 1e-12)
    return y / norm


# Full-f32 reference (module semantics) — loose-tolerance sanity check.
def textnn_reference_f32(x, params):
    weights, biases, w_last = params
    h = x.astype(jnp.float32)
    for w, b in zip(weights, biases):
        h = jnp.maximum(jnp.dot(h, w, precision=jax.lax.Precision.HIGHEST) + b, 0.0)
    y = jnp.dot(h, w_last, precision=jax.lax.Precision.HIGHEST)
    norm = jnp.sqrt(jnp.sum(y * y, axis=1, keepdims=True) + 1e-12)
    return y / norm


# ----------------------------------------------------------------------------
if __name__ == "__main__":
    # Small shapes consistent with TextNN (input_dim, mid_num, output_dim scaled
    # down). Batch=12 deliberately exercises the pad-to-tile + multi-program path.
    B = 12
    IN_DIM, OUT_DIM, MID, LAYER_NUM = 64, 32, 128, 3

    key = jax.random.PRNGKey(0)
    k_params, k_x = jax.random.split(key)

    params = make_textnn_params(k_params, IN_DIM, OUT_DIM, MID, LAYER_NUM)
    x = jax.random.normal(k_x, (B, IN_DIM), jnp.float32)

    out = textnn_forward(x, params)
    out = jax.block_until_ready(out)

    assert out.shape == (B, OUT_DIM)
    assert bool(jnp.all(jnp.isfinite(out)))

    ref_bf16 = textnn_reference_bf16(x, params)
    assert bool(jnp.allclose(out, ref_bf16, rtol=5e-3, atol=5e-3)), (
        "max abs diff vs bf16 reference: %e"
        % float(jnp.max(jnp.abs(out - ref_bf16))))

    ref_f32 = textnn_reference_f32(x, params)
    assert bool(jnp.allclose(out, ref_f32, rtol=3e-2, atol=3e-2)), (
        "max abs diff vs f32 reference: %e"
        % float(jnp.max(jnp.abs(out - ref_f32))))

    print("KERNEL_OK")
</pallas_src>

<mosaic_0001>
module attributes {stable_mosaic.version = 11 : i64} {
  func.func @kernel(%arg0: i32, %arg1: memref<8x64xbf16, #tpu.memory_space<vmem>>, %arg2: memref<64x128xbf16, #tpu.memory_space<vmem>>, %arg3: memref<1x128xf32, #tpu.memory_space<vmem>>, %arg4: memref<128x128xbf16, #tpu.memory_space<vmem>>, %arg5: memref<1x128xf32, #tpu.memory_space<vmem>>, %arg6: memref<128x128xbf16, #tpu.memory_space<vmem>>, %arg7: memref<1x128xf32, #tpu.memory_space<vmem>>, %arg8: memref<128x128xbf16, #tpu.memory_space<vmem>>, %arg9: memref<8x128xf32, #tpu.memory_space<vmem>>) attributes {dimension_semantics = [#tpu.dimension_semantics<parallel>], iteration_bounds = array<i64: 2>, scalar_prefetch = 0 : i64, scratch_operands = 0 : i64, tpu.core_type = #tpu.core_type<tc>, window_params = [{transform_indices = @transform_0, window_bounds = array<i64: 8, 64>}, {pipeline_mode = #tpu.pipeline_mode<synchronous>, transform_indices = @transform_1, window_bounds = array<i64: 64, 128>}, {pipeline_mode = #tpu.pipeline_mode<synchronous>, transform_indices = @transform_2, window_bounds = array<i64: 1, 128>}, {pipeline_mode = #tpu.pipeline_mode<synchronous>, transform_indices = @transform_3, window_bounds = array<i64: 128, 128>}, {pipeline_mode = #tpu.pipeline_mode<synchronous>, transform_indices = @transform_4, window_bounds = array<i64: 1, 128>}, {pipeline_mode = #tpu.pipeline_mode<synchronous>, transform_indices = @transform_5, window_bounds = array<i64: 128, 128>}, {pipeline_mode = #tpu.pipeline_mode<synchronous>, transform_indices = @transform_6, window_bounds = array<i64: 1, 128>}, {pipeline_mode = #tpu.pipeline_mode<synchronous>, transform_indices = @transform_7, window_bounds = array<i64: 128, 128>}, {transform_indices = @transform_8, window_bounds = array<i64: 8, 128>}]} {
    %c0 = arith.constant 0 : index
    %c0_0 = arith.constant 0 : index
    %0 = vector.load %arg1[%c0, %c0_0] : memref<8x64xbf16, #tpu.memory_space<vmem>>, vector<8x64xbf16>
    %c0_1 = arith.constant 0 : index
    %c0_2 = arith.constant 0 : index
    %1 = vector.load %arg2[%c0_1, %c0_2] : memref<64x128xbf16, #tpu.memory_space<vmem>>, vector<64x128xbf16>
    %cst = arith.constant dense<0.000000e+00> : vector<8x128xf32>
    %2 = tpu.matmul %0, %1, %cst {dimension_numbers = #tpu.dot_dimension_numbers<[1], [0], [0], [1], [0, 0, 1, 1], [], []>} : vector<8x64xbf16>, vector<64x128xbf16>, vector<8x128xf32> -> vector<8x128xf32>
    %c0_3 = arith.constant 0 : index
    %c0_4 = arith.constant 0 : index
    %3 = vector.load %arg3[%c0_3, %c0_4] : memref<1x128xf32, #tpu.memory_space<vmem>>, vector<1x128xf32>
    %4 = vector.broadcast %3 : vector<1x128xf32> to vector<8x128xf32>
    %5 = arith.addf %2, %4 : vector<8x128xf32>
    %cst_5 = arith.constant 0.000000e+00 : f32
    %6 = vector.broadcast %cst_5 : f32 to vector<8x128xf32>
    %7 = arith.maximumf %5, %6 : vector<8x128xf32>
    %8 = arith.truncf %7 : vector<8x128xf32> to vector<8x128xbf16>
    %c0_6 = arith.constant 0 : index
    %c0_7 = arith.constant 0 : index
    %9 = vector.load %arg4[%c0_6, %c0_7] : memref<128x128xbf16, #tpu.memory_space<vmem>>, vector<128x128xbf16>
    %cst_8 = arith.constant dense<0.000000e+00> : vector<8x128xf32>
    %10 = tpu.matmul %8, %9, %cst_8 {dimension_numbers = #tpu.dot_dimension_numbers<[1], [0], [0], [1], [0, 0, 1, 1], [], []>} : vector<8x128xbf16>, vector<128x128xbf16>, vector<8x128xf32> -> vector<8x128xf32>
    %c0_9 = arith.constant 0 : index
    %c0_10 = arith.constant 0 : index
    %11 = vector.load %arg5[%c0_9, %c0_10] : memref<1x128xf32, #tpu.memory_space<vmem>>, vector<1x128xf32>
    %12 = vector.broadcast %11 : vector<1x128xf32> to vector<8x128xf32>
    %13 = arith.addf %10, %12 : vector<8x128xf32>
    %cst_11 = arith.constant 0.000000e+00 : f32
    %14 = vector.broadcast %cst_11 : f32 to vector<8x128xf32>
    %15 = arith.maximumf %13, %14 : vector<8x128xf32>
    %16 = arith.truncf %15 : vector<8x128xf32> to vector<8x128xbf16>
    %c0_12 = arith.constant 0 : index
    %c0_13 = arith.constant 0 : index
    %17 = vector.load %arg6[%c0_12, %c0_13] : memref<128x128xbf16, #tpu.memory_space<vmem>>, vector<128x128xbf16>
    %cst_14 = arith.constant dense<0.000000e+00> : vector<8x128xf32>
    %18 = tpu.matmul %16, %17, %cst_14 {dimension_numbers = #tpu.dot_dimension_numbers<[1], [0], [0], [1], [0, 0, 1, 1], [], []>} : vector<8x128xbf16>, vector<128x128xbf16>, vector<8x128xf32> -> vector<8x128xf32>
    %c0_15 = arith.constant 0 : index
    %c0_16 = arith.constant 0 : index
    %19 = vector.load %arg7[%c0_15, %c0_16] : memref<1x128xf32, #tpu.memory_space<vmem>>, vector<1x128xf32>
    %20 = vector.broadcast %19 : vector<1x128xf32> to vector<8x128xf32>
    %21 = arith.addf %18, %20 : vector<8x128xf32>
    %cst_17 = arith.constant 0.000000e+00 : f32
    %22 = vector.broadcast %cst_17 : f32 to vector<8x128xf32>
    %23 = arith.maximumf %21, %22 : vector<8x128xf32>
    %24 = arith.truncf %23 : vector<8x128xf32> to vector<8x128xbf16>
    %c0_18 = arith.constant 0 : index
    %c0_19 = arith.constant 0 : index
    %25 = vector.load %arg8[%c0_18, %c0_19] : memref<128x128xbf16, #tpu.memory_space<vmem>>, vector<128x128xbf16>
    %cst_20 = arith.constant dense<0.000000e+00> : vector<8x128xf32>
    %26 = tpu.matmul %24, %25, %cst_20 {dimension_numbers = #tpu.dot_dimension_numbers<[1], [0], [0], [1], [0, 0, 1, 1], [], []>} : vector<8x128xbf16>, vector<128x128xbf16>, vector<8x128xf32> -> vector<8x128xf32>
    %27 = arith.mulf %26, %26 : vector<8x128xf32>
    %cst_21 = arith.constant dense<0.000000e+00> : vector<8xf32>
    %28 = vector.multi_reduction <add>, %27, %cst_21 [1] : vector<8x128xf32> to vector<8xf32>
    %29 = vector.shape_cast %28 : vector<8xf32> to vector<8x1xf32>
    %cst_22 = arith.constant 9.99999996E-13 : f32
    %30 = vector.broadcast %cst_22 : f32 to vector<8x1xf32>
    %31 = arith.addf %29, %30 : vector<8x1xf32>
    %32 = math.rsqrt %31 : vector<8x1xf32>
    %33 = vector.broadcast %32 : vector<8x1xf32> to vector<8x128xf32>
    %34 = arith.mulf %26, %33 : vector<8x128xf32>
    %c0_23 = arith.constant 0 : index
    %c0_24 = arith.constant 0 : index
    %35 = vector.load %arg9[%c0_23, %c0_24] : memref<8x128xf32, #tpu.memory_space<vmem>>, vector<8x128xf32>
    tpu.vector_store %arg9[%c0_23, %c0_24], %34 {strides = array<i32>} : memref<8x128xf32, #tpu.memory_space<vmem>>, vector<8x128xf32>,
    return
  }
  func.func @transform_0(%arg0: i32) -> (i32, i32) {
    %c0_i32 = arith.constant 0 : i32
    %c0_i32_0 = arith.constant 0 : i32
    return %arg0, %c0_i32 : i32, i32
  }
  func.func @transform_1(%arg0: i32) -> (i32, i32) {
    %c0_i32 = arith.constant 0 : i32
    %c0_i32_0 = arith.constant 0 : i32
    %c0_i32_1 = arith.constant 0 : i32
    return %c0_i32, %c0_i32_0 : i32, i32
  }
  func.func @transform_2(%arg0: i32) -> (i32, i32) {
    %c0_i32 = arith.constant 0 : i32
    %c0_i32_0 = arith.constant 0 : i32
    %c0_i32_1 = arith.constant 0 : i32
    return %c0_i32, %c0_i32_0 : i32, i32
  }
  func.func @transform_3(%arg0: i32) -> (i32, i32) {
    %c0_i32 = arith.constant 0 : i32
    %c0_i32_0 = arith.constant 0 : i32
    %c0_i32_1 = arith.constant 0 : i32
    return %c0_i32, %c0_i32_0 : i32, i32
  }
  func.func @transform_4(%arg0: i32) -> (i32, i32) {
    %c0_i32 = arith.constant 0 : i32
    %c0_i32_0 = arith.constant 0 : i32
    %c0_i32_1 = arith.constant 0 : i32
    return %c0_i32, %c0_i32_0 : i32, i32
  }
  func.func @transform_5(%arg0: i32) -> (i32, i32) {
    %c0_i32 = arith.constant 0 : i32
    %c0_i32_0 = arith.constant 0 : i32
    %c0_i32_1 = arith.constant 0 : i32
    return %c0_i32, %c0_i32_0 : i32, i32
  }
  func.func @transform_6(%arg0: i32) -> (i32, i32) {
    %c0_i32 = arith.constant 0 : i32
    %c0_i32_0 = arith.constant 0 : i32
    %c0_i32_1 = arith.constant 0 : i32
    return %c0_i32, %c0_i32_0 : i32, i32
  }
  func.func @transform_7(%arg0: i32) -> (i32, i32) {
    %c0_i32 = arith.constant 0 : i32
    %c0_i32_0 = arith.constant 0 : i32
    %c0_i32_1 = arith.constant 0 : i32
    return %c0_i32, %c0_i32_0 : i32, i32
  }
  func.func @transform_8(%arg0: i32) -> (i32, i32) {
    %c0_i32 = arith.constant 0 : i32
    %c0_i32_0 = arith.constant 0 : i32
    return %arg0, %c0_i32 : i32, i32
  }
}

module attributes {stable_mosaic.version = 11 : i64} {
  func.func @kernel(%arg0: i32, %arg1: memref<8x64xbf16, #tpu.memory_space<vmem>>, %arg2: memref<64x128xbf16, #tpu.memory_space<vmem>>, %arg3: memref<1x128xf32, #tpu.memory_space<vmem>>, %arg4: memref<128x128xbf16, #tpu.memory_space<vmem>>, %arg5: memref<1x128xf32, #tpu.memory_space<vmem>>, %arg6: memref<128x128xbf16, #tpu.memory_space<vmem>>, %arg7: memref<1x128xf32, #tpu.memory_space<vmem>>, %arg8: memref<128x128xbf16, #tpu.memory_space<vmem>>, %arg9: memref<8x128xf32, #tpu.memory_space<vmem>>) attributes {dimension_semantics = [#tpu.dimension_semantics<parallel>], iteration_bounds = array<i64: 2>, scalar_prefetch = 0 : i64, scratch_operands = 0 : i64, tpu.core_type = #tpu.core_type<tc>, window_params = [{transform_indices = @transform_0, window_bounds = array<i64: 8, 64>}, {pipeline_mode = #tpu.pipeline_mode<synchronous>, transform_indices = @transform_1, window_bounds = array<i64: 64, 128>}, {pipeline_mode = #tpu.pipeline_mode<synchronous>, transform_indices = @transform_2, window_bounds = array<i64: 1, 128>}, {pipeline_mode = #tpu.pipeline_mode<synchronous>, transform_indices = @transform_3, window_bounds = array<i64: 128, 128>}, {pipeline_mode = #tpu.pipeline_mode<synchronous>, transform_indices = @transform_4, window_bounds = array<i64: 1, 128>}, {pipeline_mode = #tpu.pipeline_mode<synchronous>, transform_indices = @transform_5, window_bounds = array<i64: 128, 128>}, {pipeline_mode = #tpu.pipeline_mode<synchronous>, transform_indices = @transform_6, window_bounds = array<i64: 1, 128>}, {pipeline_mode = #tpu.pipeline_mode<synchronous>, transform_indices = @transform_7, window_bounds = array<i64: 128, 128>}, {transform_indices = @transform_8, window_bounds = array<i64: 8, 128>}]} {
    %c0 = arith.constant 0 : index
    %c0_0 = arith.constant 0 : index
    %0 = vector.load %arg1[%c0, %c0_0] : memref<8x64xbf16, #tpu.memory_space<vmem>>, vector<8x64xbf16>
    %c0_1 = arith.constant 0 : index
    %c0_2 = arith.constant 0 : index
    %1 = vector.load %arg2[%c0_1, %c0_2] : memref<64x128xbf16, #tpu.memory_space<vmem>>, vector<64x128xbf16>
    %cst = arith.constant dense<0.000000e+00> : vector<8x128xf32>
    %2 = tpu.matmul %0, %1, %cst {dimension_numbers = #tpu.dot_dimension_numbers<[1], [0], [0], [1], [0, 0, 1, 1], [], []>} : vector<8x64xbf16>, vector<64x128xbf16>, vector<8x128xf32> -> vector<8x128xf32>
    %c0_3 = arith.constant 0 : index
    %c0_4 = arith.constant 0 : index
    %3 = vector.load %arg3[%c0_3, %c0_4] : memref<1x128xf32, #tpu.memory_space<vmem>>, vector<1x128xf32>
    %4 = vector.broadcast %3 : vector<1x128xf32> to vector<8x128xf32>
    %5 = arith.addf %2, %4 : vector<8x128xf32>
    %cst_5 = arith.constant 0.000000e+00 : f32
    %6 = vector.broadcast %cst_5 : f32 to vector<8x128xf32>
    %7 = arith.maximumf %5, %6 : vector<8x128xf32>
    %8 = arith.truncf %7 : vector<8x128xf32> to vector<8x128xbf16>
    %c0_6 = arith.constant 0 : index
    %c0_7 = arith.constant 0 : index
    %9 = vector.load %arg4[%c0_6, %c0_7] : memref<128x128xbf16, #tpu.memory_space<vmem>>, vector<128x128xbf16>
    %cst_8 = arith.constant dense<0.000000e+00> : vector<8x128xf32>
    %10 = tpu.matmul %8, %9, %cst_8 {dimension_numbers = #tpu.dot_dimension_numbers<[1], [0], [0], [1], [0, 0, 1, 1], [], []>} : vector<8x128xbf16>, vector<128x128xbf16>, vector<8x128xf32> -> vector<8x128xf32>
    %c0_9 = arith.constant 0 : index
    %c0_10 = arith.constant 0 : index
    %11 = vector.load %arg5[%c0_9, %c0_10] : memref<1x128xf32, #tpu.memory_space<vmem>>, vector<1x128xf32>
    %12 = vector.broadcast %11 : vector<1x128xf32> to vector<8x128xf32>
    %13 = arith.addf %10, %12 : vector<8x128xf32>
    %cst_11 = arith.constant 0.000000e+00 : f32
    %14 = vector.broadcast %cst_11 : f32 to vector<8x128xf32>
    %15 = arith.maximumf %13, %14 : vector<8x128xf32>
    %16 = arith.truncf %15 : vector<8x128xf32> to vector<8x128xbf16>
    %c0_12 = arith.constant 0 : index
    %c0_13 = arith.constant 0 : index
    %17 = vector.load %arg6[%c0_12, %c0_13] : memref<128x128xbf16, #tpu.memory_space<vmem>>, vector<128x128xbf16>
    %cst_14 = arith.constant dense<0.000000e+00> : vector<8x128xf32>
    %18 = tpu.matmul %16, %17, %cst_14 {dimension_numbers = #tpu.dot_dimension_numbers<[1], [0], [0], [1], [0, 0, 1, 1], [], []>} : vector<8x128xbf16>, vector<128x128xbf16>, vector<8x128xf32> -> vector<8x128xf32>
    %c0_15 = arith.constant 0 : index
    %c0_16 = arith.constant 0 : index
    %19 = vector.load %arg7[%c0_15, %c0_16] : memref<1x128xf32, #tpu.memory_space<vmem>>, vector<1x128xf32>
    %20 = vector.broadcast %19 : vector<1x128xf32> to vector<8x128xf32>
    %21 = arith.addf %18, %20 : vector<8x128xf32>
    %cst_17 = arith.constant 0.000000e+00 : f32
    %22 = vector.broadcast %cst_17 : f32 to vector<8x128xf32>
    %23 = arith.maximumf %21, %22 : vector<8x128xf32>
    %24 = arith.truncf %23 : vector<8x128xf32> to vector<8x128xbf16>
    %c0_18 = arith.constant 0 : index
    %c0_19 = arith.constant 0 : index
    %25 = vector.load %arg8[%c0_18, %c0_19] : memref<128x128xbf16, #tpu.memory_space<vmem>>, vector<128x128xbf16>
    %cst_20 = arith.constant dense<0.000000e+00> : vector<8x128xf32>
    %26 = tpu.matmul %24, %25, %cst_20 {dimension_numbers = #tpu.dot_dimension_numbers<[1], [0], [0], [1], [0, 0, 1, 1], [], []>} : vector<8x128xbf16>, vector<128x128xbf16>, vector<8x128xf32> -> vector<8x128xf32>
    %27 = arith.mulf %26, %26 : vector<8x128xf32>
    %cst_21 = arith.constant dense<0.000000e+00> : vector<8xf32>
    %28 = vector.multi_reduction <add>, %27, %cst_21 [1] : vector<8x128xf32> to vector<8xf32>
    %29 = vector.shape_cast %28 : vector<8xf32> to vector<8x1xf32>
    %cst_22 = arith.constant 9.99999996E-13 : f32
    %30 = vector.broadcast %cst_22 : f32 to vector<8x1xf32>
    %31 = arith.addf %29, %30 : vector<8x1xf32>
    %32 = math.rsqrt %31 : vector<8x1xf32>
    %33 = vector.broadcast %32 : vector<8x1xf32> to vector<8x128xf32>
    %34 = arith.mulf %26, %33 : vector<8x128xf32>
    %c0_23 = arith.constant 0 : index
    %c0_24 = arith.constant 0 : index
    %35 = vector.load %arg9[%c0_23, %c0_24] : memref<8x128xf32, #tpu.memory_space<vmem>>, vector<8x128xf32>
    tpu.vector_store %arg9[%c0_23, %c0_24], %34 {strides = array<i32>} : memref<8x128xf32, #tpu.memory_space<vmem>>, vector<8x128xf32>,
    return
  }
  func.func @transform_0(%arg0: i32) -> (i32, i32) {
    %c0_i32 = arith.constant 0 : i32
    %c0_i32_0 = arith.constant 0 : i32
    return %arg0, %c0_i32 : i32, i32
  }
  func.func @transform_1(%arg0: i32) -> (i32, i32) {
    %c0_i32 = arith.constant 0 : i32
    %c0_i32_0 = arith.constant 0 : i32
    %c0_i32_1 = arith.constant 0 : i32
    return %c0_i32, %c0_i32_0 : i32, i32
  }
  func.func @transform_2(%arg0: i32) -> (i32, i32) {
    %c0_i32 = arith.constant 0 : i32
    %c0_i32_0 = arith.constant 0 : i32
    %c0_i32_1 = arith.constant 0 : i32
    return %c0_i32, %c0_i32_0 : i32, i32
  }
  func.func @transform_3(%arg0: i32) -> (i32, i32) {
    %c0_i32 = arith.constant 0 : i32
    %c0_i32_0 = arith.constant 0 : i32
    %c0_i32_1 = arith.constant 0 : i32
    return %c0_i32, %c0_i32_0 : i32, i32
  }
  func.func @transform_4(%arg0: i32) -> (i32, i32) {
    %c0_i32 = arith.constant 0 : i32
    %c0_i32_0 = arith.constant 0 : i32
    %c0_i32_1 = arith.constant 0 : i32
    return %c0_i32, %c0_i32_0 : i32, i32
  }
  func.func @transform_5(%arg0: i32) -> (i32, i32) {
    %c0_i32 = arith.constant 0 : i32
    %c0_i32_0 = arith.constant 0 : i32
    %c0_i32_1 = arith.constant 0 : i32
    return %c0_i32, %c0_i32_0 : i32, i32
  }
  func.func @transform_6(%arg0: i32) -> (i32, i32) {
    %c0_i32 = arith.constant 0 : i32
    %c0_i32_0 = arith.constant 0 : i32
    %c0_i32_1 = arith.constant 0 : i32
    return %c0_i32, %c0_i32_0 : i32, i32
  }
  func.func @transform_7(%arg0: i32) -> (i32, i32) {
    %c0_i32 = arith.constant 0 : i32
    %c0_i32_0 = arith.constant 0 : i32
    %c0_i32_1 = arith.constant 0 : i32
    return %c0_i32, %c0_i32_0 : i32, i32
  }
  func.func @transform_8(%arg0: i32) -> (i32, i32) {
    %c0_i32 = arith.constant 0 : i32
    %c0_i32_0 = arith.constant 0 : i32
    return %arg0, %c0_i32 : i32, i32
  }
}

</mosaic_0001>

<llo_original>
// kernel: tpu_custom_call.1
$region0: #{tpu_custom_call.1}
  #allocation0 [shape = 'u32[]', space=smem, size = 0x4, offset = 0x4, fixed_abs, tag = 'smem constant byte address 0x4 - core index']
  #allocation1 [shape = 'u32[144,128]{1,0:T(1,128)}', space=vmem, size = 0x12000, scoped, tag = 'internal scratch']
  %s0 = inlined_call_operand.hbm [shape: bf16[16,64], index: 0, kind: input, shape index: {}]
  %s1 = inlined_call_operand.hbm [shape: bf16[64,128], index: 1, kind: input, shape index: {}]
  %s2 = inlined_call_operand.vmem [shape: f32[1,128], index: 2, kind: input, shape index: {}]
  %s3 = inlined_call_operand.hbm [shape: bf16[128,128], index: 3, kind: input, shape index: {}]
  %s4 = inlined_call_operand.vmem [shape: f32[1,128], index: 4, kind: input, shape index: {}]
  %s5 = inlined_call_operand.hbm [shape: bf16[128,128], index: 5, kind: input, shape index: {}]
  %s6 = inlined_call_operand.vmem [shape: f32[1,128], index: 6, kind: input, shape index: {}]
  %s7 = inlined_call_operand.hbm [shape: bf16[128,128], index: 7, kind: input, shape index: {}]
  %s8 = inlined_call_operand.hbm [shape: f32[16,128], index: 8, kind: output, shape index: {}]
  %s9 = sld [smem:[#allocation0]]
  $region85: #{tpu_custom_call.1} parent=0
    _
  %s11 = ssub.s32 1, %s9
  %s12 = scalar_select 0, %s11, %s9
  $region1: #{tpu_custom_call.1} parent=0
    #allocation2 [shape = 'u8[4096]{0}', space=vmem, size = 0x1000, scoped, tag = 'input window, operand 0']
    #allocation3 [shape = 's32[2]{0}', space=sflag, size = 0x8, scoped, tag = 'scoped memory for tpu_custom_call.1']
    #allocation4 [shape = 's32[2]{0}', space=sflag, size = 0x8, scoped, tag = 'scoped memory for tpu_custom_call.1']
    #allocation5 [shape = 'u8[16384]{0}', space=vmem, size = 0x4000, scoped, tag = 'input window, operand 1, single buffered']
    #allocation6 [shape = 's32[1]{0}', space=sflag, size = 0x4, scoped, tag = 'scoped memory for tpu_custom_call.1']
    #allocation7 [shape = 'u8[32768]{0}', space=vmem, size = 0x8000, scoped, tag = 'input window, operand 3, single buffered']
    #allocation8 [shape = 'u8[32768]{0}', space=vmem, size = 0x8000, scoped, tag = 'input window, operand 5, single buffered']
    #allocation9 [shape = 's32[1]{0}', space=sflag, size = 0x4, scoped, tag = 'scoped memory for tpu_custom_call.1']
    #allocation10 [shape = 'u8[32768]{0}', space=vmem, size = 0x8000, scoped, tag = 'input window, operand 7, single buffered']
    #allocation11 [shape = 'u8[8192]{0}', space=vmem, size = 0x2000, scoped, tag = 'output window, operand 0']
    %13 = vsyncpa [#allocation3], 0
    %s14 = scalar_lea.sflag [#allocation3], 1
    %15 = vsyncpa %s14, 0
    %16 = vsyncpa [#allocation6], 0
    %17 = vsyncpa [#allocation9], 0
    %18 = vsyncpa [#allocation4], 0
    %s19 = scalar_lea.sflag [#allocation4], 1
    %20 = vsyncpa %s19, 0
    loop: start=0, step=1, limit=4
    $region2: #{tpu_custom_call.1} parent=1 // loop_pre_header
      _
    $region3: #{tpu_custom_call.1} parent=1 // loop_header
      %s22 = sphi 0, %s26
      %p23 = scmp.ge.s32.totalorder %s22, 4
      %s32 = sphi 0, %s34
      %s35 = sphi 0, %s32
      %s36 = sphi 0, %s35
      %s52 = sphi 0, %s36
      %s56 = sphi 0, %s56
      %s58 = sphi 0, %s56
      %s59 = sphi 0, %s58
      %s73 = sphi 0, %s59
      %s77 = sphi 0, %s77
      %s79 = sphi 0, %s77
      %s80 = sphi 0, %s79
      %s94 = sphi 0, %s80
      %s98 = sphi 0, %s98
      %s100 = sphi 0, %s98
      %s101 = sphi 0, %s100
      %s115 = sphi 0, %s101
      %s119 = sphi 0, %s119
      %s121 = sphi 0, %s119
      %s122 = sphi 0, %s121
      %s136 = sphi 0, %s122
      %s140 = sphi 0, %s140
      %s142 = sphi 0, %s140
      %s143 = sphi 0, %s142
      %s157 = sphi 0, %s143
      %s161 = sphi 0, %s161
      %s163 = sphi 0, %s161
      %s164 = sphi 0, %s163
      %s178 = sphi 0, %s164
      %s182 = sphi 0, %s182
      %s184 = sphi 0, %s182
      %s185 = sphi 0, %s184
      %s199 = sphi 0, %s185
      %s205 = sphi 0, %s207
      %s208 = sphi 0, %s205
      %s209 = sphi 0, %s208
      %s225 = sphi 0, %s209
    $region4: #{tpu_custom_call.1} parent=1 // loop_header_branch
      %25 = sbr.rel (%p23) target = $region8
    $region5: #{tpu_custom_call.1} parent=1 // loop_body
      %s27 = ssub.s32 %s22, 1
      %s28 = ssub.s32 %s22, 2
      %s29 = sadd.s32 %s22, 1
      %s30 = ssub.s32 %s22, %s29
      %p31 = scmp.eq.s32.totalorder %s30, 0
      %s33 = sadd.s32 %s32, 1
      %s34 = scalar_select %p31, %s32, %s33
      %p37 = pneg %p31
      %p38 = scmp.eq.s32.totalorder %s22, 1
      %p39 = por %p37, %p38
      %p40 = scmp.ne.s32.totalorder %s32, %s35
      %p41 = scmp.eq.s32.totalorder %s22, 0
      %p42 = por %p40, %p41
      %p43 = scmp.ne.s32.totalorder %s32, %s35
      %p44 = scmp.eq.s32.totalorder %s27, 1
      %p45 = por %p43, %p44
      %p46 = scmp.ne.s32.totalorder %s35, %s36
      %p47 = scmp.eq.s32.totalorder %s27, 0
      %p48 = por %p46, %p47
      %p49 = scmp.ne.s32.totalorder %s35, %s36
      %p50 = scmp.eq.s32.totalorder %s28, 1
      %p51 = por %p49, %p50
      %p53 = scmp.ne.s32.totalorder %s36, %s52
      %p54 = scmp.eq.s32.totalorder %s28, 0
      %p55 = por %p53, %p54
      %s57 = sadd.s32 %s56, 1
      %p60 = scmp.eq.s32.totalorder %s22, 1
      %p61 = scmp.ne.s32.totalorder %s56, %s58
      %p62 = scmp.eq.s32.totalorder %s22, 0
      %p63 = por %p61, %p62
      %p64 = scmp.ne.s32.totalorder %s56, %s58
      %p65 = scmp.eq.s32.totalorder %s27, 1
      %p66 = por %p64, %p65
      %p67 = scmp.ne.s32.totalorder %s58, %s59
      %p68 = scmp.eq.s32.totalorder %s27, 0
      %p69 = por %p67, %p68
      %p70 = scmp.ne.s32.totalorder %s58, %s59
      %p71 = scmp.eq.s32.totalorder %s28, 1
      %p72 = por %p70, %p71
      %p74 = scmp.ne.s32.totalorder %s59, %s73
      %p75 = scmp.eq.s32.totalorder %s28, 0
      %p76 = por %p74, %p75
      %s78 = sadd.s32 %s77, 1
      %p81 = scmp.eq.s32.totalorder %s22, 1
      %p82 = scmp.ne.s32.totalorder %s77, %s79
      %p83 = scmp.eq.s32.totalorder %s22, 0
      %p84 = por %p82, %p83
      %p85 = scmp.ne.s32.totalorder %s77, %s79
      %p86 = scmp.eq.s32.totalorder %s27, 1
      %p87 = por %p85, %p86
      %p88 = scmp.ne.s32.totalorder %s79, %s80
      %p89 = scmp.eq.s32.totalorder %s27, 0
      %p90 = por %p88, %p89
      %p91 = scmp.ne.s32.totalorder %s79, %s80
      %p92 = scmp.eq.s32.totalorder %s28, 1
      %p93 = por %p91, %p92
      %p95 = scmp.ne.s32.totalorder %s80, %s94
      %p96 = scmp.eq.s32.totalorder %s28, 0
      %p97 = por %p95, %p96
      %s99 = sadd.s32 %s98, 1
      %p102 = scmp.eq.s32.totalorder %s22, 1
      %p103 = scmp.ne.s32.totalorder %s98, %s100
      %p104 = scmp.eq.s32.totalorder %s22, 0
      %p105 = por %p103, %p104
      %p106 = scmp.ne.s32.totalorder %s98, %s100
      %p107 = scmp.eq.s32.totalorder %s27, 1
      %p108 = por %p106, %p107
      %p109 = scmp.ne.s32.totalorder %s100, %s101
      %p110 = scmp.eq.s32.totalorder %s27, 0
      %p111 = por %p109, %p110
      %p112 = scmp.ne.s32.totalorder %s100, %s101
      %p113 = scmp.eq.s32.totalorder %s28, 1
      %p114 = por %p112, %p113
      %p116 = scmp.ne.s32.totalorder %s101, %s115
      %p117 = scmp.eq.s32.totalorder %s28, 0
      %p118 = por %p116, %p117
      %s120 = sadd.s32 %s119, 1
      %p123 = scmp.eq.s32.totalorder %s22, 1
      %p124 = scmp.ne.s32.totalorder %s119, %s121
      %p125 = scmp.eq.s32.totalorder %s22, 0
      %p126 = por %p124, %p125
      %p127 = scmp.ne.s32.totalorder %s119, %s121
      %p128 = scmp.eq.s32.totalorder %s27, 1
      %p129 = por %p127, %p128
      %p130 = scmp.ne.s32.totalorder %s121, %s122
      %p131 = scmp.eq.s32.totalorder %s27, 0
      %p132 = por %p130, %p131
      %p133 = scmp.ne.s32.totalorder %s121, %s122
      %p134 = scmp.eq.s32.totalorder %s28, 1
      %p135 = por %p133, %p134
      %p137 = scmp.ne.s32.totalorder %s122, %s136
      %p138 = scmp.eq.s32.totalorder %s28, 0
      %p139 = por %p137, %p138
      %s141 = sadd.s32 %s140, 1
      %p144 = scmp.eq.s32.totalorder %s22, 1
      %p145 = scmp.ne.s32.totalorder %s140, %s142
      %p146 = scmp.eq.s32.totalorder %s22, 0
      %p147 = por %p145, %p146
      %p148 = scmp.ne.s32.totalorder %s140, %s142
      %p149 = scmp.eq.s32.totalorder %s27, 1
      %p150 = por %p148, %p149
      %p151 = scmp.ne.s32.totalorder %s142, %s143
      %p152 = scmp.eq.s32.totalorder %s27, 0
      %p153 = por %p151, %p152
      %p154 = scmp.ne.s32.totalorder %s142, %s143
      %p155 = scmp.eq.s32.totalorder %s28, 1
      %p156 = por %p154, %p155
      %p158 = scmp.ne.s32.totalorder %s143, %s157
      %p159 = scmp.eq.s32.totalorder %s28, 0
      %p160 = por %p158, %p159
      %s162 = sadd.s32 %s161, 1
      %p165 = scmp.eq.s32.totalorder %s22, 1
      %p166 = scmp.ne.s32.totalorder %s161, %s163
      %p167 = scmp.eq.s32.totalorder %s22, 0
      %p168 = por %p166, %p167
      %p169 = scmp.ne.s32.totalorder %s161, %s163
      %p170 = scmp.eq.s32.totalorder %s27, 1
      %p171 = por %p169, %p170
      %p172 = scmp.ne.s32.totalorder %s163, %s164
      %p173 = scmp.eq.s32.totalorder %s27, 0
      %p174 = por %p172, %p173
      %p175 = scmp.ne.s32.totalorder %s163, %s164
      %p176 = scmp.eq.s32.totalorder %s28, 1
      %p177 = por %p175, %p176
      %p179 = scmp.ne.s32.totalorder %s164, %s178
      %p180 = scmp.eq.s32.totalorder %s28, 0
      %p181 = por %p179, %p180
      %s183 = sadd.s32 %s182, 1
      %p186 = scmp.eq.s32.totalorder %s22, 1
      %p187 = scmp.ne.s32.totalorder %s182, %s184
      %p188 = scmp.eq.s32.totalorder %s22, 0
      %p189 = por %p187, %p188
      %p190 = scmp.ne.s32.totalorder %s182, %s184
      %p191 = scmp.eq.s32.totalorder %s27, 1
      %p192 = por %p190, %p191
      %p193 = scmp.ne.s32.totalorder %s184, %s185
      %p194 = scmp.eq.s32.totalorder %s27, 0
      %p195 = por %p193, %p194
      %p196 = scmp.ne.s32.totalorder %s184, %s185
      %p197 = scmp.eq.s32.totalorder %s28, 1
      %p198 = por %p196, %p197
      %p200 = scmp.ne.s32.totalorder %s185, %s199
      %p201 = scmp.eq.s32.totalorder %s28, 0
      %p202 = por %p200, %p201
      %s203 = ssub.s32 %s22, %s29
      %p204 = scmp.eq.s32.totalorder %s203, 0
      %s206 = sadd.s32 %s205, 1
      %s207 = scalar_select %p204, %s205, %s206
      %p210 = pneg %p204
      %p211 = scmp.eq.s32.totalorder %s22, 1
      %p212 = por %p210, %p211
      %p213 = scmp.ne.s32.totalorder %s205, %s208
      %p214 = scmp.eq.s32.totalorder %s22, 0
      %p215 = por %p213, %p214
      %p216 = scmp.ne.s32.totalorder %s205, %s208
      %p217 = scmp.eq.s32.totalorder %s27, 1
      %p218 = por %p216, %p217
      %p219 = scmp.ne.s32.totalorder %s208, %s209
      %p220 = scmp.eq.s32.totalorder %s27, 0
      %p221 = por %p219, %p220
      %p222 = scmp.ne.s32.totalorder %s208, %s209
      %p223 = scmp.eq.s32.totalorder %s28, 1
      %p224 = por %p222, %p223
      %p226 = scmp.ne.s32.totalorder %s209, %s225
      %p227 = scmp.eq.s32.totalorder %s28, 0
      %p228 = por %p226, %p227
      %p229 = scmp.le.s32.totalorder 1, %s22
      %p230 = scmp.lt.s32.totalorder %s22, 3
      %p231 = pnand %p229, %p230
      %p232 = pneg %p231
      // Predicated region
      $region9: #{tpu_custom_call.1} parent=5 // pred_check
        _
      $region10: #{tpu_custom_call.1} parent=5 // pred_check_branch
        %234 = sbr.rel (%p231) target = $region12
      $region11: #{tpu_custom_call.1} parent=5 // pred_region
        %s235 = ssub.s32 %s22, 1
        // Predicated region
        $region13: #{tpu_custom_call.1} parent=11 // pred_check
          %p236 = pneg %p69
        $region14: #{tpu_custom_call.1} parent=11 // pred_check_branch
          %238 = sbr.rel (%p236) target = $region16
        $region15: #{tpu_custom_call.1} parent=11 // pred_region
          %s240 = ssub.s32 512, 512
          %241 = vsyncadd [#allocation6], %s240
          %s242 = sshll.u32 [#allocation5], 4
          %s243 = int_to_ptr.vmem [resolvable:$true] %s242
          %248 = dma.hbm_to_vmem [thread:$0]  %s1, 512, %s243, [#allocation6], 64, 64, 4
        $region16: #{tpu_custom_call.1} parent=11 // pred_fallthru
          _
        // Predicated region
        $region17: #{tpu_custom_call.1} parent=11 // pred_check
          %p249 = pneg %p90
        $region18: #{tpu_custom_call.1} parent=11 // pred_check_branch
          %251 = sbr.rel (%p249) target = $region20
        $region19: #{tpu_custom_call.1} parent=11 // pred_region
          _
        $region20: #{tpu_custom_call.1} parent=11 // pred_fallthru
          _
        // Predicated region
        $region21: #{tpu_custom_call.1} parent=11 // pred_check
          %p252 = pneg %p111
        $region22: #{tpu_custom_call.1} parent=11 // pred_check_branch
          %254 = sbr.rel (%p252) target = $region24
        $region23: #{tpu_custom_call.1} parent=11 // pred_region
          %s256 = ssub.s32 1024, 1024
          %257 = vsyncadd [#allocation6], %s256
          %s258 = sshll.u32 [#allocation7], 4
          %s259 = int_to_ptr.vmem [resolvable:$true] %s258
          %264 = dma.hbm_to_vmem [thread:$0]  %s3, 1024, %s259, [#allocation6], 64, 64, 4
        $region24: #{tpu_custom_call.1} parent=11 // pred_fallthru
          _
        // Predicated region
        $region25: #{tpu_custom_call.1} parent=11 // pred_check
          %p265 = pneg %p132
        $region26: #{tpu_custom_call.1} parent=11 // pred_check_branch
          %267 = sbr.rel (%p265) target = $region28
        $region27: #{tpu_custom_call.1} parent=11 // pred_region
          _
        $region28: #{tpu_custom_call.1} parent=11 // pred_fallthru
          _
        // Predicated region
        $region29: #{tpu_custom_call.1} parent=11 // pred_check
          %p268 = pneg %p153
        $region30: #{tpu_custom_call.1} parent=11 // pred_check_branch
          %270 = sbr.rel (%p268) target = $region32
        $region31: #{tpu_custom_call.1} parent=11 // pred_region
          %s272 = ssub.s32 1024, 1024
          %273 = vsyncadd [#allocation9], %s272
          %s274 = sshll.u32 [#allocation8], 4
          %s275 = int_to_ptr.vmem [resolvable:$true] %s274
          %280 = dma.hbm_to_vmem [thread:$0]  %s5, 1024, %s275, [#allocation9], 64, 64, 4
        $region32: #{tpu_custom_call.1} parent=11 // pred_fallthru
          _
        // Predicated region
        $region33: #{tpu_custom_call.1} parent=11 // pred_check
          %p281 = pneg %p174
        $region34: #{tpu_custom_call.1} parent=11 // pred_check_branch
          %283 = sbr.rel (%p281) target = $region36
        $region35: #{tpu_custom_call.1} parent=11 // pred_region
          _
        $region36: #{tpu_custom_call.1} parent=11 // pred_fallthru
          _
        // Predicated region
        $region37: #{tpu_custom_call.1} parent=11 // pred_check
          %p284 = pneg %p195
        $region38: #{tpu_custom_call.1} parent=11 // pred_check_branch
          %286 = sbr.rel (%p284) target = $region40
        $region39: #{tpu_custom_call.1} parent=11 // pred_region
          %s288 = ssub.s32 1024, 1024
          %289 = vsyncadd [#allocation9], %s288
          %s290 = sshll.u32 [#allocation10], 4
          %s291 = int_to_ptr.vmem [resolvable:$true] %s290
          %296 = dma.hbm_to_vmem [thread:$0]  %s7, 1024, %s291, [#allocation9], 64, 64, 4
        $region40: #{tpu_custom_call.1} parent=11 // pred_fallthru
          _
      $region12: #{tpu_custom_call.1} parent=5 // pred_fallthru
        _
      %p297 = scmp.lt.s32.totalorder %s22, 2
      // Predicated region
      $region41: #{tpu_custom_call.1} parent=5 // pred_check
        %p298 = pneg %p297
      $region42: #{tpu_custom_call.1} parent=5 // pred_check_branch
        %300 = sbr.rel (%p298) target = $region44
      $region43: #{tpu_custom_call.1} parent=5 // pred_region
        // Predicated region
        $region45: #{tpu_custom_call.1} parent=43 // pred_check
          %p301 = pneg %p42
        $region46: #{tpu_custom_call.1} parent=43 // pred_check_branch
          %303 = sbr.rel (%p301) target = $region48
        $region47: #{tpu_custom_call.1} parent=43 // pred_region
          %s304 = sand.u32 %s32, 1
          %s305 = scalar_lea.sflag [#allocation3], %s304
          %s306 = sand.u32 %s32, 1
          %s307 = smul.addr %s306, 4
          %s308 = scalar_lea.vmem [#allocation2], %s307
          %s310 = ssub.s32 64, 64
          %311 = vsyncadd %s305, %s310
          %s312 = smul.addr %s22, 64
          %s313 = scalar_lea.hbm %s0, %s312
          %s315 = sshll.u32 %s308, 4
          %s316 = int_to_ptr.vmem [resolvable:$true] %s315
          %318 = dma.hbm_to_vmem [thread:$0]  %s313, 64, %s316, %s305
        $region48: #{tpu_custom_call.1} parent=43 // pred_fallthru
          _
      $region44: #{tpu_custom_call.1} parent=5 // pred_fallthru
        _
      %p319 = scmp.le.s32.totalorder 1, %s22
      %p320 = scmp.lt.s32.totalorder %s22, 3
      %p321 = pnand %p319, %p320
      %p322 = pneg %p321
      // Predicated region
      $region49: #{tpu_custom_call.1} parent=5 // pred_check
        _
      $region50: #{tpu_custom_call.1} parent=5 // pred_check_branch
        %324 = sbr.rel (%p321) target = $region52
      $region51: #{tpu_custom_call.1} parent=5 // pred_region
        %s325 = ssub.s32 %s22, 1
        %s326 = sand.u32 %s35, 1
        %s327 = scalar_lea.sflag [#allocation3], %s326
        %s328 = sand.u32 %s35, 1
        %s329 = smul.addr %s328, 4
        %s330 = scalar_lea.vmem [#allocation2], %s329
        // Predicated region
        $region53: #{tpu_custom_call.1} parent=51 // pred_check
          %p331 = pneg %p48
        $region54: #{tpu_custom_call.1} parent=51 // pred_check_branch
          %333 = sbr.rel (%p331) target = $region56
        $region55: #{tpu_custom_call.1} parent=51 // pred_region
          %334 = dma.done %s327, 64
        $region56: #{tpu_custom_call.1} parent=51 // pred_fallthru
          _
        // Predicated region
        $region57: #{tpu_custom_call.1} parent=51 // pred_check
          %p335 = pneg %p69
        $region58: #{tpu_custom_call.1} parent=51 // pred_check_branch
          %337 = sbr.rel (%p335) target = $region60
        $region59: #{tpu_custom_call.1} parent=51 // pred_region
          %338 = dma.done [#allocation6], 512
        $region60: #{tpu_custom_call.1} parent=51 // pred_fallthru
          _
        // Predicated region
        $region61: #{tpu_custom_call.1} parent=51 // pred_check
          %p339 = pneg %p111
        $region62: #{tpu_custom_call.1} parent=51 // pred_check_branch
          %341 = sbr.rel (%p339) target = $region64
        $region63: #{tpu_custom_call.1} parent=51 // pred_region
          %342 = dma.done [#allocation6], 1024
        $region64: #{tpu_custom_call.1} parent=51 // pred_fallthru
          _
        // Predicated region
        $region65: #{tpu_custom_call.1} parent=51 // pred_check
          %p343 = pneg %p153
        $region66: #{tpu_custom_call.1} parent=51 // pred_check_branch
          %345 = sbr.rel (%p343) target = $region68
        $region67: #{tpu_custom_call.1} parent=51 // pred_region
          %346 = dma.done [#allocation9], 1024
        $region68: #{tpu_custom_call.1} parent=51 // pred_fallthru
          _
        // Predicated region
        $region69: #{tpu_custom_call.1} parent=51 // pred_check
          %p347 = pneg %p195
        $region70: #{tpu_custom_call.1} parent=51 // pred_check_branch
          %349 = sbr.rel (%p347) target = $region72
        $region71: #{tpu_custom_call.1} parent=51 // pred_region
          %350 = dma.done [#allocation9], 1024
        $region72: #{tpu_custom_call.1} parent=51 // pred_fallthru
          _
        %s351 = sand.u32 %s35, 1
        %s352 = scalar_lea.sflag [#allocation3], %s351
        %s353 = sand.u32 %s35, 1
        %s354 = smul.addr %s353, 4
        %s355 = scalar_lea.vmem [#allocation2], %s354
        %p356 = pneg %p48
        %p357 = pneg %p45
        %p358 = pneg %p69
        %p359 = pneg %p66
        %p360 = pneg %p90
        %p361 = pneg %p87
        %p362 = pneg %p111
        %p363 = pneg %p108
        %p364 = pneg %p132
        %p365 = pneg %p129
        %p366 = pneg %p153
        %p367 = pneg %p150
        %p368 = pneg %p174
        %p369 = pneg %p171
        %p370 = pneg %p195
        %p371 = pneg %p192
        %p372 = pneg %p221
        %p373 = pneg %p218
        %s374 = sand.u32 %s208, 1
        %s375 = scalar_lea.sflag [#allocation4], %s374
        %s376 = sand.u32 %s208, 1
        %s377 = smul.addr %s376, 8
        %s378 = scalar_lea.vmem [#allocation11], %s377
        %v380 = vld [vmem:[%s330] sm:$0xf]
        %v381 = vld [vmem:[#allocation5] sm:$0xf]
        %v382 = vld [vmem:[#allocation5 + $0x4] sm:$0xf]
        %v383 = vld [vmem:[#allocation5 + $0x8] sm:$0xf]
        %v384 = vld [vmem:[#allocation5 + $0xc] sm:$0xf]
        %v385 = vld [vmem:[#allocation5 + $0x10] sm:$0xf]
        %v386 = vld [vmem:[#allocation5 + $0x14] sm:$0xf]
        %v387 = vld [vmem:[#allocation5 + $0x18] sm:$0xf]
        %v388 = vld [vmem:[#allocation5 + $0x1c] sm:$0xf]
        %v389 = vld [vmem:[%s2] sm:$0x1]
        %v391 = vlaneseq
        %v392 = vshrl.u32 %v391, 7
        %v393 = vsub.s32 0, %v392
        %v394 = vrot.slane %v389, %v393
        %v404 = vunpack.c.l.b16 %v381
        %v405 = vunpack.c.l.b16 %v382
        %v406 = vunpack.c.l.b16 %v383
        %v407 = vunpack.c.l.b16 %v384
        %v408 = vunpack.c.l.b16 %v385
        %v409 = vunpack.c.l.b16 %v386
        %v410 = vunpack.c.l.b16 %v387
        %v411 = vunpack.c.l.b16 %v388
        %v412 = vpack.c.b16 %v405, %v404
        %v413 = vpack.c.b16 %v407, %v406
        %v414 = vpack.c.b16 %v409, %v408
        %v415 = vpack.c.b16 %v411, %v410
        %vm420 = vcmask 523264
        %v422 = vsel %vm420, %v380, 0
        %424 = vmatprep.subr.bf16.mxu0 0
        %425 = vmatpush1.bf16.msra.mxu0 0
        %426 = vmatprep.subr.bf16.mxu0 0
        %427 = vmatpush1.bf16.msra.mxu0 0
        %428 = vmatprep.subr.bf16.mxu0 0
        %429 = vmatpush1.bf16.msra.mxu0 0
        %430 = vmatprep.subr.bf16.mxu0 0
        %431 = vmatpush1.bf16.msra.mxu0 0
        %432 = vmatprep.subr.bf16.mxu0 0
        %433 = vmatpush1.bf16.msra.mxu0 %v415
        %434 = vmatprep.subr.bf16.mxu0 0
        %435 = vmatpush1.bf16.msra.mxu0 %v414
        %436 = vmatprep.subr.bf16.mxu0 0
        %437 = vmatpush1.bf16.msra.mxu0 %v413
        %438 = vmatprep.subr.bf16.mxu0 0
        %439 = vmatpush1.bf16.msra.mxu0 %v412
        %440 = vmatprep.subr.bf16.mxu0 0
        %441 = vmatpush2.bf16.msra.mxu0 0
        %442 = vmatprep.subr.bf16.mxu0 0
        %443 = vmatpush2.bf16.msra.mxu0 0
        %444 = vmatprep.subr.bf16.mxu0 0
        %445 = vmatpush2.bf16.msra.mxu0 0
        %446 = vmatprep.subr.bf16.mxu0 0
        %447 = vmatpush2.bf16.msra.mxu0 0
        %448 = vmatprep.subr.bf16.mxu0 0
        %449 = vmatpush2.bf16.msra.mxu0 0
        %450 = vmatprep.subr.bf16.mxu0 0
        %451 = vmatpush2.bf16.msra.mxu0 0
        %452 = vmatprep.subr.bf16.mxu0 0
        %453 = vmatpush2.bf16.msra.mxu0 0
        %454 = vmatprep.subr.bf16.mxu0 0
        %455 = vmatpush2.bf16.msra.mxu0 0
        %456 = vmatprep.mubr.bf16.mxu0 0
        %457 = vmatmul.mubr.bf16.gmra.mxu0 %v422
        %v458 = vpop.f32.mrf.mxu0
        %v459 = vadd.f32 %v394, %v458
        %v460 = vpop.f32.mrf.mxu0
        %v461 = vpop.f32.mrf.mxu0
        %v462 = vpop.f32.mrf.mxu0
        %463 = vdwg.mxu0
        %v464 = vmax.f32 %v459, 0.0
        %v465 = vpack.c.bf16 %v464, %v464
        %v466 = vld [vmem:[#allocation7] sm:$0xf]
        %v467 = vld [vmem:[#allocation7 + $0x4] sm:$0xf]
        %v468 = vld [vmem:[#allocation7 + $0x8] sm:$0xf]
        %v469 = vld [vmem:[#allocation7 + $0xc] sm:$0xf]
        %v470 = vld [vmem:[#allocation7 + $0x10] sm:$0xf]
        %v471 = vld [vmem:[#allocation7 + $0x14] sm:$0xf]
        %v472 = vld [vmem:[#allocation7 + $0x18] sm:$0xf]
        %v473 = vld [vmem:[#allocation7 + $0x1c] sm:$0xf]
        %v474 = vld [vmem:[#allocation7 + $0x20] sm:$0xf]
        %v475 = vld [vmem:[#allocation7 + $0x24] sm:$0xf]
        %v476 = vld [vmem:[#allocation7 + $0x28] sm:$0xf]
        %v477 = vld [vmem:[#allocation7 + $0x2c] sm:$0xf]
        %v478 = vld [vmem:[#allocation7 + $0x30] sm:$0xf]
        %v479 = vld [vmem:[#allocation7 + $0x34] sm:$0xf]
        %v480 = vld [vmem:[#allocation7 + $0x38] sm:$0xf]
        %v481 = vld [vmem:[#allocation7 + $0x3c] sm:$0xf]
        %v482 = vld [vmem:[%s4] sm:$0x1]
        %v484 = vlaneseq
        %v485 = vshrl.u32 %v484, 7
        %v486 = vsub.s32 0, %v485
        %v487 = vrot.slane %v482, %v486
        %v505 = vunpack.c.l.b16 %v466
        %v506 = vunpack.c.l.b16 %v467
        %v507 = vunpack.c.l.b16 %v468
        %v508 = vunpack.c.l.b16 %v469
        %v509 = vunpack.c.l.b16 %v470
        %v510 = vunpack.c.l.b16 %v471
        %v511 = vunpack.c.l.b16 %v472
        %v512 = vunpack.c.l.b16 %v473
        %v513 = vunpack.c.l.b16 %v474
        %v514 = vunpack.c.l.b16 %v475
        %v515 = vunpack.c.l.b16 %v476
        %v516 = vunpack.c.l.b16 %v477
        %v517 = vunpack.c.l.b16 %v478
        %v518 = vunpack.c.l.b16 %v479
        %v519 = vunpack.c.l.b16 %v480
        %v520 = vunpack.c.l.b16 %v481
        %v521 = vpack.c.b16 %v506, %v505
        %v522 = vpack.c.b16 %v508, %v507
        %v523 = vpack.c.b16 %v510, %v509
        %v524 = vpack.c.b16 %v512, %v511
        %v525 = vpack.c.b16 %v514, %v513
        %v526 = vpack.c.b16 %v516, %v515
        %v527 = vpack.c.b16 %v518, %v517
        %v528 = vpack.c.b16 %v520, %v519
        %537 = vmatprep.subr.bf16.mxu0 0
        %538 = vmatpush1.bf16.msra.mxu0 %v528
        %539 = vmatprep.subr.bf16.mxu0 0
        %540 = vmatpush1.bf16.msra.mxu0 %v527
        %541 = vmatprep.subr.bf16.mxu0 0
        %542 = vmatpush1.bf16.msra.mxu0 %v526
        %543 = vmatprep.subr.bf16.mxu0 0
        %544 = vmatpush1.bf16.msra.mxu0 %v525
        %545 = vmatprep.subr.bf16.mxu0 0
        %546 = vmatpush1.bf16.msra.mxu0 %v524
        %547 = vmatprep.subr.bf16.mxu0 0
        %548 = vmatpush1.bf16.msra.mxu0 %v523
        %549 = vmatprep.subr.bf16.mxu0 0
        %550 = vmatpush1.bf16.msra.mxu0 %v522
        %551 = vmatprep.subr.bf16.mxu0 0
        %552 = vmatpush1.bf16.msra.mxu0 %v521
        %553 = vmatprep.subr.bf16.mxu0 0
        %554 = vmatpush2.bf16.msra.mxu0 0
        %555 = vmatprep.subr.bf16.mxu0 0
        %556 = vmatpush2.bf16.msra.mxu0 0
        %557 = vmatprep.subr.bf16.mxu0 0
        %558 = vmatpush2.bf16.msra.mxu0 0
        %559 = vmatprep.subr.bf16.mxu0 0
        %560 = vmatpush2.bf16.msra.mxu0 0
        %561 = vmatprep.subr.bf16.mxu0 0
        %562 = vmatpush2.bf16.msra.mxu0 0
        %563 = vmatprep.subr.bf16.mxu0 0
        %564 = vmatpush2.bf16.msra.mxu0 0
        %565 = vmatprep.subr.bf16.mxu0 0
        %566 = vmatpush2.bf16.msra.mxu0 0
        %567 = vmatprep.subr.bf16.mxu0 0
        %568 = vmatpush2.bf16.msra.mxu0 0
        %569 = vmatprep.mubr.bf16.mxu0 0
        %570 = vmatmul.mubr.bf16.gmra.mxu0 %v465
        %v571 = vpop.f32.mrf.mxu0
        %v572 = vadd.f32 %v487, %v571
        %v573 = vpop.f32.mrf.mxu0
        %v574 = vpop.f32.mrf.mxu0
        %v575 = vpop.f32.mrf.mxu0
        %576 = vdwg.mxu0
        %v577 = vmax.f32 %v572, 0.0
        %v578 = vpack.c.bf16 %v577, %v577
        %v579 = vld [vmem:[#allocation8] sm:$0xf]
        %v580 = vld [vmem:[#allocation8 + $0x4] sm:$0xf]
        %v581 = vld [vmem:[#allocation8 + $0x8] sm:$0xf]
        %v582 = vld [vmem:[#allocation8 + $0xc] sm:$0xf]
        %v583 = vld [vmem:[#allocation8 + $0x10] sm:$0xf]
        %v584 = vld [vmem:[#allocation8 + $0x14] sm:$0xf]
        %v585 = vld [vmem:[#allocation8 + $0x18] sm:$0xf]
        %v586 = vld [vmem:[#allocation8 + $0x1c] sm:$0xf]
        %v587 = vld [vmem:[#allocation8 + $0x20] sm:$0xf]
        %v588 = vld [vmem:[#allocation8 + $0x24] sm:$0xf]
        %v589 = vld [vmem:[#allocation8 + $0x28] sm:$0xf]
        %v590 = vld [vmem:[#allocation8 + $0x2c] sm:$0xf]
        %v591 = vld [vmem:[#allocation8 + $0x30] sm:$0xf]
        %v592 = vld [vmem:[#allocation8 + $0x34] sm:$0xf]
        %v593 = vld [vmem:[#allocation8 + $0x38] sm:$0xf]
        %v594 = vld [vmem:[#allocation8 + $0x3c] sm:$0xf]
        %v595 = vld [vmem:[%s6] sm:$0x1]
        %v597 = vlaneseq
        %v598 = vshrl.u32 %v597, 7
        %v599 = vsub.s32 0, %v598
        %v600 = vrot.slane %v595, %v599
        %v618 = vunpack.c.l.b16 %v579
        %v619 = vunpack.c.l.b16 %v580
        %v620 = vunpack.c.l.b16 %v581
        %v621 = vunpack.c.l.b16 %v582
        %v622 = vunpack.c.l.b16 %v583
        %v623 = vunpack.c.l.b16 %v584
        %v624 = vunpack.c.l.b16 %v585
        %v625 = vunpack.c.l.b16 %v586
        %v626 = vunpack.c.l.b16 %v587
        %v627 = vunpack.c.l.b16 %v588
        %v628 = vunpack.c.l.b16 %v589
        %v629 = vunpack.c.l.b16 %v590
        %v630 = vunpack.c.l.b16 %v591
        %v631 = vunpack.c.l.b16 %v592
        %v632 = vunpack.c.l.b16 %v593
        %v633 = vunpack.c.l.b16 %v594
        %v634 = vpack.c.b16 %v619, %v618
        %v635 = vpack.c.b16 %v621, %v620
        %v636 = vpack.c.b16 %v623, %v622
        %v637 = vpack.c.b16 %v625, %v624
        %v638 = vpack.c.b16 %v627, %v626
        %v639 = vpack.c.b16 %v629, %v628
        %v640 = vpack.c.b16 %v631, %v630
        %v641 = vpack.c.b16 %v633, %v632
        %650 = vmatprep.subr.bf16.mxu0 0
        %651 = vmatpush1.bf16.msra.mxu0 %v641
        %652 = vmatprep.subr.bf16.mxu0 0
        %653 = vmatpush1.bf16.msra.mxu0 %v640
        %654 = vmatprep.subr.bf16.mxu0 0
        %655 = vmatpush1.bf16.msra.mxu0 %v639
        %656 = vmatprep.subr.bf16.mxu0 0
        %657 = vmatpush1.bf16.msra.mxu0 %v638
        %658 = vmatprep.subr.bf16.mxu0 0
        %659 = vmatpush1.bf16.msra.mxu0 %v637
        %660 = vmatprep.subr.bf16.mxu0 0
        %661 = vmatpush1.bf16.msra.mxu0 %v636
        %662 = vmatprep.subr.bf16.mxu0 0
        %663 = vmatpush1.bf16.msra.mxu0 %v635
        %664 = vmatprep.subr.bf16.mxu0 0
        %665 = vmatpush1.bf16.msra.mxu0 %v634
        %666 = vmatprep.subr.bf16.mxu0 0
        %667 = vmatpush2.bf16.msra.mxu0 0
        %668 = vmatprep.subr.bf16.mxu0 0
        %669 = vmatpush2.bf16.msra.mxu0 0
        %670 = vmatprep.subr.bf16.mxu0 0
        %671 = vmatpush2.bf16.msra.mxu0 0
        %672 = vmatprep.subr.bf16.mxu0 0
        %673 = vmatpush2.bf16.msra.mxu0 0
        %674 = vmatprep.subr.bf16.mxu0 0
        %675 = vmatpush2.bf16.msra.mxu0 0
        %676 = vmatprep.subr.bf16.mxu0 0
        %677 = vmatpush2.bf16.msra.mxu0 0
        %678 = vmatprep.subr.bf16.mxu0 0
        %679 = vmatpush2.bf16.msra.mxu0 0
        %680 = vmatprep.subr.bf16.mxu0 0
        %681 = vmatpush2.bf16.msra.mxu0 0
        %682 = vmatprep.mubr.bf16.mxu0 0
        %683 = vmatmul.mubr.bf16.gmra.mxu0 %v578
        %v684 = vpop.f32.mrf.mxu0
        %v685 = vadd.f32 %v600, %v684
        %v686 = vpop.f32.mrf.mxu0
        %v687 = vpop.f32.mrf.mxu0
        %v688 = vpop.f32.mrf.mxu0
        %689 = vdwg.mxu0
        %v690 = vmax.f32 %v685, 0.0
        %v691 = vpack.c.bf16 %v690, %v690
        %v692 = vld [vmem:[#allocation10] sm:$0xf]
        %v693 = vld [vmem:[#allocation10 + $0x4] sm:$0xf]
        %v694 = vld [vmem:[#allocation10 + $0x8] sm:$0xf]
        %v695 = vld [vmem:[#allocation10 + $0xc] sm:$0xf]
        %v696 = vld [vmem:[#allocation10 + $0x10] sm:$0xf]
        %v697 = vld [vmem:[#allocation10 + $0x14] sm:$0xf]
        %v698 = vld [vmem:[#allocation10 + $0x18] sm:$0xf]
        %v699 = vld [vmem:[#allocation10 + $0x1c] sm:$0xf]
        %v700 = vld [vmem:[#allocation10 + $0x20] sm:$0xf]
        %v701 = vld [vmem:[#allocation10 + $0x24] sm:$0xf]
        %v702 = vld [vmem:[#allocation10 + $0x28] sm:$0xf]
        %v703 = vld [vmem:[#allocation10 + $0x2c] sm:$0xf]
        %v704 = vld [vmem:[#allocation10 + $0x30] sm:$0xf]
        %v705 = vld [vmem:[#allocation10 + $0x34] sm:$0xf]
        %v706 = vld [vmem:[#allocation10 + $0x38] sm:$0xf]
        %v707 = vld [vmem:[#allocation10 + $0x3c] sm:$0xf]
        %v724 = vunpack.c.l.b16 %v692
        %v725 = vunpack.c.l.b16 %v693
        %v726 = vunpack.c.l.b16 %v694
        %v727 = vunpack.c.l.b16 %v695
        %v728 = vunpack.c.l.b16 %v696
        %v729 = vunpack.c.l.b16 %v697
        %v730 = vunpack.c.l.b16 %v698
        %v731 = vunpack.c.l.b16 %v699
        %v732 = vunpack.c.l.b16 %v700
        %v733 = vunpack.c.l.b16 %v701
        %v734 = vunpack.c.l.b16 %v702
        %v735 = vunpack.c.l.b16 %v703
        %v736 = vunpack.c.l.b16 %v704
        %v737 = vunpack.c.l.b16 %v705
        %v738 = vunpack.c.l.b16 %v706
        %v739 = vunpack.c.l.b16 %v707
        %v740 = vpack.c.b16 %v725, %v724
        %v741 = vpack.c.b16 %v727, %v726
        %v742 = vpack.c.b16 %v729, %v728
        %v743 = vpack.c.b16 %v731, %v730
        %v744 = vpack.c.b16 %v733, %v732
        %v745 = vpack.c.b16 %v735, %v734
        %v746 = vpack.c.b16 %v737, %v736
        %v747 = vpack.c.b16 %v739, %v738
        %756 = vmatprep.subr.bf16.mxu0 0
        %757 = vmatpush1.bf16.msra.mxu0 %v747
        %758 = vmatprep.subr.bf16.mxu0 0
        %759 = vmatpush1.bf16.msra.mxu0 %v746
        %760 = vmatprep.subr.bf16.mxu0 0
        %761 = vmatpush1.bf16.msra.mxu0 %v745
        %762 = vmatprep.subr.bf16.mxu0 0
        %763 = vmatpush1.bf16.msra.mxu0 %v744
        %764 = vmatprep.subr.bf16.mxu0 0
        %765 = vmatpush1.bf16.msra.mxu0 %v743
        %766 = vmatprep.subr.bf16.mxu0 0
        %767 = vmatpush1.bf16.msra.mxu0 %v742
        %768 = vmatprep.subr.bf16.mxu0 0
        %769 = vmatpush1.bf16.msra.mxu0 %v741
        %770 = vmatprep.subr.bf16.mxu0 0
        %771 = vmatpush1.bf16.msra.mxu0 %v740
        %772 = vmatprep.subr.bf16.mxu0 0
        %773 = vmatpush2.bf16.msra.mxu0 0
        %774 = vmatprep.subr.bf16.mxu0 0
        %775 = vmatpush2.bf16.msra.mxu0 0
        %776 = vmatprep.subr.bf16.mxu0 0
        %777 = vmatpush2.bf16.msra.mxu0 0
        %778 = vmatprep.subr.bf16.mxu0 0
        %779 = vmatpush2.bf16.msra.mxu0 0
        %780 = vmatprep.subr.bf16.mxu0 0
        %781 = vmatpush2.bf16.msra.mxu0 0
        %782 = vmatprep.subr.bf16.mxu0 0
        %783 = vmatpush2.bf16.msra.mxu0 0
        %784 = vmatprep.subr.bf16.mxu0 0
        %785 = vmatpush2.bf16.msra.mxu0 0
        %786 = vmatprep.subr.bf16.mxu0 0
        %787 = vmatpush2.bf16.msra.mxu0 0
        %788 = vmatprep.mubr.bf16.mxu0 0
        %789 = vmatmul.mubr.bf16.gmra.mxu0 %v691
        %v790 = vpop.f32.mrf.mxu0
        %v791 = vadd.f32 0.0, %v790
        %v792 = vpop.f32.mrf.mxu0
        %v793 = vpop.f32.mrf.mxu0
        %v794 = vpop.f32.mrf.mxu0
        %795 = vdwg.mxu0
        %v796 = vmul.f32 %v791, %v791
        %797 = vadd.xlane.f32.xlu0 %v796
        %v798 = vpop.xlane.xlu0 %797
        %v799 = vadd.f32 %v798, 1e-12
        %v800 = vrsqrt.pop %v799
        %v801 = vmul.f32 %v791, %v800
        %802 = vst [vmem:[%s378] sm:$0xff] %v801
        %s803 = sand.u32 %s208, 1
        %s804 = scalar_lea.sflag [#allocation4], %s803
        %s805 = sand.u32 %s208, 1
        %s806 = smul.addr %s805, 8
        %s807 = scalar_lea.vmem [#allocation11], %s806
        // Predicated region
        $region73: #{tpu_custom_call.1} parent=51 // pred_check
          %p808 = pneg %p218
        $region74: #{tpu_custom_call.1} parent=51 // pred_check_branch
          %810 = sbr.rel (%p808) target = $region76
        $region75: #{tpu_custom_call.1} parent=51 // pred_region
          %s812 = ssub.s32 128, 128
          %813 = vsyncadd %s804, %s812
          %s814 = smul.addr %s27, 128
          %s815 = scalar_lea.hbm %s8, %s814
          %s817 = sshll.u32 %s807, 4
          %s818 = int_to_ptr.vmem [resolvable:$true] %s817
          %820 = dma.vmem_to_hbm [thread:$0]  %s818, 128, %s815, %s804
        $region76: #{tpu_custom_call.1} parent=51 // pred_fallthru
          _
      $region52: #{tpu_custom_call.1} parent=5 // pred_fallthru
        _
      %p821 = scmp.le.s32.totalorder 2, %s22
      // Predicated region
      $region77: #{tpu_custom_call.1} parent=5 // pred_check
        %p822 = pneg %p821
      $region78: #{tpu_custom_call.1} parent=5 // pred_check_branch
        %824 = sbr.rel (%p822) target = $region80
      $region79: #{tpu_custom_call.1} parent=5 // pred_region
        %s825 = ssub.s32 %s22, 2
        // Predicated region
        $region81: #{tpu_custom_call.1} parent=79 // pred_check
          %p826 = pneg %p224
        $region82: #{tpu_custom_call.1} parent=79 // pred_check_branch
          %828 = sbr.rel (%p826) target = $region84
        $region83: #{tpu_custom_call.1} parent=79 // pred_region
          %s829 = sand.u32 %s209, 1
          %s830 = scalar_lea.sflag [#allocation4], %s829
          %s831 = sand.u32 %s209, 1
          %s832 = smul.addr %s831, 8
          %s833 = scalar_lea.vmem [#allocation11], %s832
          %834 = dma.done %s830, 128
        $region84: #{tpu_custom_call.1} parent=79 // pred_fallthru
          _
      $region80: #{tpu_custom_call.1} parent=5 // pred_fallthru
        _
    $region6: #{tpu_custom_call.1} parent=1 // loop_footer
      %s26 = sadd.s32 1, %s22
    $region7: #{tpu_custom_call.1} parent=1 // loop_footer_branch
      %21 = sbr.rel target = $region3
    $region8: #{tpu_custom_call.1} parent=1 // loop_exit
      _
    %835 = vsyncpa [#allocation3], 1
    %s836 = scalar_lea.sflag [#allocation3], 1
    %837 = vsyncpa %s836, 1
    %838 = vsyncpa [#allocation6], 1
    %839 = vsyncpa [#allocation9], 1
    %840 = vsyncpa [#allocation4], 1
    %s841 = scalar_lea.sflag [#allocation4], 1
    %842 = vsyncpa %s841, 1

// kernel: tpu_custom_call.1
$region0: #{tpu_custom_call.1}
  #allocation0 [shape = 'u32[]', space=smem, size = 0x4, offset = 0x4, fixed_abs, tag = 'smem constant byte address 0x4 - core index']
  #allocation1 [shape = 'u32[144,128]{1,0:T(1,128)}', space=vmem, size = 0x12000, scoped, tag = 'internal scratch']
  %s0 = inlined_call_operand.hbm [shape: bf16[16,64], index: 0, kind: input, shape index: {}]
  %s1 = inlined_call_operand.hbm [shape: bf16[64,128], index: 1, kind: input, shape index: {}]
  %s2 = inlined_call_operand.vmem [shape: f32[1,128], index: 2, kind: input, shape index: {}]
  %s3 = inlined_call_operand.hbm [shape: bf16[128,128], index: 3, kind: input, shape index: {}]
  %s4 = inlined_call_operand.vmem [shape: f32[1,128], index: 4, kind: input, shape index: {}]
  %s5 = inlined_call_operand.hbm [shape: bf16[128,128], index: 5, kind: input, shape index: {}]
  %s6 = inlined_call_operand.vmem [shape: f32[1,128], index: 6, kind: input, shape index: {}]
  %s7 = inlined_call_operand.hbm [shape: bf16[128,128], index: 7, kind: input, shape index: {}]
  %s8 = inlined_call_operand.hbm [shape: f32[16,128], index: 8, kind: output, shape index: {}]
  %s9 = sld [smem:[#allocation0]]
  $region85: #{tpu_custom_call.1} parent=0
    _
  %s11 = ssub.s32 1, %s9
  %s12 = scalar_select 0, %s11, %s9
  $region1: #{tpu_custom_call.1} parent=0
    #allocation2 [shape = 'u8[4096]{0}', space=vmem, size = 0x1000, scoped, tag = 'input window, operand 0']
    #allocation3 [shape = 's32[2]{0}', space=sflag, size = 0x8, scoped, tag = 'scoped memory for tpu_custom_call.1']
    #allocation4 [shape = 's32[2]{0}', space=sflag, size = 0x8, scoped, tag = 'scoped memory for tpu_custom_call.1']
    #allocation5 [shape = 'u8[16384]{0}', space=vmem, size = 0x4000, scoped, tag = 'input window, operand 1, single buffered']
    #allocation6 [shape = 's32[1]{0}', space=sflag, size = 0x4, scoped, tag = 'scoped memory for tpu_custom_call.1']
    #allocation7 [shape = 'u8[32768]{0}', space=vmem, size = 0x8000, scoped, tag = 'input window, operand 3, single buffered']
    #allocation8 [shape = 'u8[32768]{0}', space=vmem, size = 0x8000, scoped, tag = 'input window, operand 5, single buffered']
    #allocation9 [shape = 's32[1]{0}', space=sflag, size = 0x4, scoped, tag = 'scoped memory for tpu_custom_call.1']
    #allocation10 [shape = 'u8[32768]{0}', space=vmem, size = 0x8000, scoped, tag = 'input window, operand 7, single buffered']
    #allocation11 [shape = 'u8[8192]{0}', space=vmem, size = 0x2000, scoped, tag = 'output window, operand 0']
    %13 = vsyncpa [#allocation3], 0
    %s14 = scalar_lea.sflag [#allocation3], 1
    %15 = vsyncpa %s14, 0
    %16 = vsyncpa [#allocation6], 0
    %17 = vsyncpa [#allocation9], 0
    %18 = vsyncpa [#allocation4], 0
    %s19 = scalar_lea.sflag [#allocation4], 1
    %20 = vsyncpa %s19, 0
    loop: start=0, step=1, limit=4
    $region2: #{tpu_custom_call.1} parent=1 // loop_pre_header
      _
    $region3: #{tpu_custom_call.1} parent=1 // loop_header
      %s22 = sphi 0, %s26
      %p23 = scmp.ge.s32.totalorder %s22, 4
      %s32 = sphi 0, %s34
      %s35 = sphi 0, %s32
      %s36 = sphi 0, %s35
      %s52 = sphi 0, %s36
      %s56 = sphi 0, %s56
      %s58 = sphi 0, %s56
      %s59 = sphi 0, %s58
      %s73 = sphi 0, %s59
      %s77 = sphi 0, %s77
      %s79 = sphi 0, %s77
      %s80 = sphi 0, %s79
      %s94 = sphi 0, %s80
      %s98 = sphi 0, %s98
      %s100 = sphi 0, %s98
      %s101 = sphi 0, %s100
      %s115 = sphi 0, %s101
      %s119 = sphi 0, %s119
      %s121 = sphi 0, %s119
      %s122 = sphi 0, %s121
      %s136 = sphi 0, %s122
      %s140 = sphi 0, %s140
      %s142 = sphi 0, %s140
      %s143 = sphi 0, %s142
      %s157 = sphi 0, %s143
      %s161 = sphi 0, %s161
      %s163 = sphi 0, %s161
      %s164 = sphi 0, %s163
      %s178 = sphi 0, %s164
      %s182 = sphi 0, %s182
      %s184 = sphi 0, %s182
      %s185 = sphi 0, %s184
      %s199 = sphi 0, %s185
      %s205 = sphi 0, %s207
      %s208 = sphi 0, %s205
      %s209 = sphi 0, %s208
      %s225 = sphi 0, %s209
    $region4: #{tpu_custom_call.1} parent=1 // loop_header_branch
      %25 = sbr.rel (%p23) target = $region8
    $region5: #{tpu_custom_call.1} parent=1 // loop_body
      %s27 = ssub.s32 %s22, 1
      %s28 = ssub.s32 %s22, 2
      %s29 = sadd.s32 %s22, 1
      %s30 = ssub.s32 %s22, %s29
      %p31 = scmp.eq.s32.totalorder %s30, 0
      %s33 = sadd.s32 %s32, 1
      %s34 = scalar_select %p31, %s32, %s33
      %p37 = pneg %p31
      %p38 = scmp.eq.s32.totalorder %s22, 1
      %p39 = por %p37, %p38
      %p40 = scmp.ne.s32.totalorder %s32, %s35
      %p41 = scmp.eq.s32.totalorder %s22, 0
      %p42 = por %p40, %p41
      %p43 = scmp.ne.s32.totalorder %s32, %s35
      %p44 = scmp.eq.s32.totalorder %s27, 1
      %p45 = por %p43, %p44
      %p46 = scmp.ne.s32.totalorder %s35, %s36
      %p47 = scmp.eq.s32.totalorder %s27, 0
      %p48 = por %p46, %p47
      %p49 = scmp.ne.s32.totalorder %s35, %s36
      %p50 = scmp.eq.s32.totalorder %s28, 1
      %p51 = por %p49, %p50
      %p53 = scmp.ne.s32.totalorder %s36, %s52
      %p54 = scmp.eq.s32.totalorder %s28, 0
      %p55 = por %p53, %p54
      %s57 = sadd.s32 %s56, 1
      %p60 = scmp.eq.s32.totalorder %s22, 1
      %p61 = scmp.ne.s32.totalorder %s56, %s58
      %p62 = scmp.eq.s32.totalorder %s22, 0
      %p63 = por %p61, %p62
      %p64 = scmp.ne.s32.totalorder %s56, %s58
      %p65 = scmp.eq.s32.totalorder %s27, 1
      %p66 = por %p64, %p65
      %p67 = scmp.ne.s32.totalorder %s58, %s59
      %p68 = scmp.eq.s32.totalorder %s27, 0
      %p69 = por %p67, %p68
      %p70 = scmp.ne.s32.totalorder %s58, %s59
      %p71 = scmp.eq.s32.totalorder %s28, 1
      %p72 = por %p70, %p71
      %p74 = scmp.ne.s32.totalorder %s59, %s73
      %p75 = scmp.eq.s32.totalorder %s28, 0
      %p76 = por %p74, %p75
      %s78 = sadd.s32 %s77, 1
      %p81 = scmp.eq.s32.totalorder %s22, 1
      %p82 = scmp.ne.s32.totalorder %s77, %s79
      %p83 = scmp.eq.s32.totalorder %s22, 0
      %p84 = por %p82, %p83
      %p85 = scmp.ne.s32.totalorder %s77, %s79
      %p86 = scmp.eq.s32.totalorder %s27, 1
      %p87 = por %p85, %p86
      %p88 = scmp.ne.s32.totalorder %s79, %s80
      %p89 = scmp.eq.s32.totalorder %s27, 0
      %p90 = por %p88, %p89
      %p91 = scmp.ne.s32.totalorder %s79, %s80
      %p92 = scmp.eq.s32.totalorder %s28, 1
      %p93 = por %p91, %p92
      %p95 = scmp.ne.s32.totalorder %s80, %s94
      %p96 = scmp.eq.s32.totalorder %s28, 0
      %p97 = por %p95, %p96
      %s99 = sadd.s32 %s98, 1
      %p102 = scmp.eq.s32.totalorder %s22, 1
      %p103 = scmp.ne.s32.totalorder %s98, %s100
      %p104 = scmp.eq.s32.totalorder %s22, 0
      %p105 = por %p103, %p104
      %p106 = scmp.ne.s32.totalorder %s98, %s100
      %p107 = scmp.eq.s32.totalorder %s27, 1
      %p108 = por %p106, %p107
      %p109 = scmp.ne.s32.totalorder %s100, %s101
      %p110 = scmp.eq.s32.totalorder %s27, 0
      %p111 = por %p109, %p110
      %p112 = scmp.ne.s32.totalorder %s100, %s101
      %p113 = scmp.eq.s32.totalorder %s28, 1
      %p114 = por %p112, %p113
      %p116 = scmp.ne.s32.totalorder %s101, %s115
      %p117 = scmp.eq.s32.totalorder %s28, 0
      %p118 = por %p116, %p117
      %s120 = sadd.s32 %s119, 1
      %p123 = scmp.eq.s32.totalorder %s22, 1
      %p124 = scmp.ne.s32.totalorder %s119, %s121
      %p125 = scmp.eq.s32.totalorder %s22, 0
      %p126 = por %p124, %p125
      %p127 = scmp.ne.s32.totalorder %s119, %s121
      %p128 = scmp.eq.s32.totalorder %s27, 1
      %p129 = por %p127, %p128
      %p130 = scmp.ne.s32.totalorder %s121, %s122
      %p131 = scmp.eq.s32.totalorder %s27, 0
      %p132 = por %p130, %p131
      %p133 = scmp.ne.s32.totalorder %s121, %s122
      %p134 = scmp.eq.s32.totalorder %s28, 1
      %p135 = por %p133, %p134
      %p137 = scmp.ne.s32.totalorder %s122, %s136
      %p138 = scmp.eq.s32.totalorder %s28, 0
      %p139 = por %p137, %p138
      %s141 = sadd.s32 %s140, 1
      %p144 = scmp.eq.s32.totalorder %s22, 1
      %p145 = scmp.ne.s32.totalorder %s140, %s142
      %p146 = scmp.eq.s32.totalorder %s22, 0
      %p147 = por %p145, %p146
      %p148 = scmp.ne.s32.totalorder %s140, %s142
      %p149 = scmp.eq.s32.totalorder %s27, 1
      %p150 = por %p148, %p149
      %p151 = scmp.ne.s32.totalorder %s142, %s143
      %p152 = scmp.eq.s32.totalorder %s27, 0
      %p153 = por %p151, %p152
      %p154 = scmp.ne.s32.totalorder %s142, %s143
      %p155 = scmp.eq.s32.totalorder %s28, 1
      %p156 = por %p154, %p155
      %p158 = scmp.ne.s32.totalorder %s143, %s157
      %p159 = scmp.eq.s32.totalorder %s28, 0
      %p160 = por %p158, %p159
      %s162 = sadd.s32 %s161, 1
      %p165 = scmp.eq.s32.totalorder %s22, 1
      %p166 = scmp.ne.s32.totalorder %s161, %s163
      %p167 = scmp.eq.s32.totalorder %s22, 0
      %p168 = por %p166, %p167
      %p169 = scmp.ne.s32.totalorder %s161, %s163
      %p170 = scmp.eq.s32.totalorder %s27, 1
      %p171 = por %p169, %p170
      %p172 = scmp.ne.s32.totalorder %s163, %s164
      %p173 = scmp.eq.s32.totalorder %s27, 0
      %p174 = por %p172, %p173
      %p175 = scmp.ne.s32.totalorder %s163, %s164
      %p176 = scmp.eq.s32.totalorder %s28, 1
      %p177 = por %p175, %p176
      %p179 = scmp.ne.s32.totalorder %s164, %s178
      %p180 = scmp.eq.s32.totalorder %s28, 0
      %p181 = por %p179, %p180
      %s183 = sadd.s32 %s182, 1
      %p186 = scmp.eq.s32.totalorder %s22, 1
      %p187 = scmp.ne.s32.totalorder %s182, %s184
      %p188 = scmp.eq.s32.totalorder %s22, 0
      %p189 = por %p187, %p188
      %p190 = scmp.ne.s32.totalorder %s182, %s184
      %p191 = scmp.eq.s32.totalorder %s27, 1
      %p192 = por %p190, %p191
      %p193 = scmp.ne.s32.totalorder %s184, %s185
      %p194 = scmp.eq.s32.totalorder %s27, 0
      %p195 = por %p193, %p194
      %p196 = scmp.ne.s32.totalorder %s184, %s185
      %p197 = scmp.eq.s32.totalorder %s28, 1
      %p198 = por %p196, %p197
      %p200 = scmp.ne.s32.totalorder %s185, %s199
      %p201 = scmp.eq.s32.totalorder %s28, 0
      %p202 = por %p200, %p201
      %s203 = ssub.s32 %s22, %s29
      %p204 = scmp.eq.s32.totalorder %s203, 0
      %s206 = sadd.s32 %s205, 1
      %s207 = scalar_select %p204, %s205, %s206
      %p210 = pneg %p204
      %p211 = scmp.eq.s32.totalorder %s22, 1
      %p212 = por %p210, %p211
      %p213 = scmp.ne.s32.totalorder %s205, %s208
      %p214 = scmp.eq.s32.totalorder %s22, 0
      %p215 = por %p213, %p214
      %p216 = scmp.ne.s32.totalorder %s205, %s208
      %p217 = scmp.eq.s32.totalorder %s27, 1
      %p218 = por %p216, %p217
      %p219 = scmp.ne.s32.totalorder %s208, %s209
      %p220 = scmp.eq.s32.totalorder %s27, 0
      %p221 = por %p219, %p220
      %p222 = scmp.ne.s32.totalorder %s208, %s209
      %p223 = scmp.eq.s32.totalorder %s28, 1
      %p224 = por %p222, %p223
      %p226 = scmp.ne.s32.totalorder %s209, %s225
      %p227 = scmp.eq.s32.totalorder %s28, 0
      %p228 = por %p226, %p227
      %p229 = scmp.le.s32.totalorder 1, %s22
      %p230 = scmp.lt.s32.totalorder %s22, 3
      %p231 = pnand %p229, %p230
      %p232 = pneg %p231
      // Predicated region
      $region9: #{tpu_custom_call.1} parent=5 // pred_check
        _
      $region10: #{tpu_custom_call.1} parent=5 // pred_check_branch
        %234 = sbr.rel (%p231) target = $region12
      $region11: #{tpu_custom_call.1} parent=5 // pred_region
        %s235 = ssub.s32 %s22, 1
        // Predicated region
        $region13: #{tpu_custom_call.1} parent=11 // pred_check
          %p236 = pneg %p69
        $region14: #{tpu_custom_call.1} parent=11 // pred_check_branch
          %238 = sbr.rel (%p236) target = $region16
        $region15: #{tpu_custom_call.1} parent=11 // pred_region
          %s240 = ssub.s32 512, 512
          %241 = vsyncadd [#allocation6], %s240
          %s242 = sshll.u32 [#allocation5], 4
          %s243 = int_to_ptr.vmem [resolvable:$true] %s242
          %248 = dma.hbm_to_vmem [thread:$0]  %s1, 512, %s243, [#allocation6], 64, 64, 4
        $region16: #{tpu_custom_call.1} parent=11 // pred_fallthru
          _
        // Predicated region
        $region17: #{tpu_custom_call.1} parent=11 // pred_check
          %p249 = pneg %p90
        $region18: #{tpu_custom_call.1} parent=11 // pred_check_branch
          %251 = sbr.rel (%p249) target = $region20
        $region19: #{tpu_custom_call.1} parent=11 // pred_region
          _
        $region20: #{tpu_custom_call.1} parent=11 // pred_fallthru
          _
        // Predicated region
        $region21: #{tpu_custom_call.1} parent=11 // pred_check
          %p252 = pneg %p111
        $region22: #{tpu_custom_call.1} parent=11 // pred_check_branch
          %254 = sbr.rel (%p252) target = $region24
        $region23: #{tpu_custom_call.1} parent=11 // pred_region
          %s256 = ssub.s32 1024, 1024
          %257 = vsyncadd [#allocation6], %s256
          %s258 = sshll.u32 [#allocation7], 4
          %s259 = int_to_ptr.vmem [resolvable:$true] %s258
          %264 = dma.hbm_to_vmem [thread:$0]  %s3, 1024, %s259, [#allocation6], 64, 64, 4
        $region24: #{tpu_custom_call.1} parent=11 // pred_fallthru
          _
        // Predicated region
        $region25: #{tpu_custom_call.1} parent=11 // pred_check
          %p265 = pneg %p132
        $region26: #{tpu_custom_call.1} parent=11 // pred_check_branch
          %267 = sbr.rel (%p265) target = $region28
        $region27: #{tpu_custom_call.1} parent=11 // pred_region
          _
        $region28: #{tpu_custom_call.1} parent=11 // pred_fallthru
          _
        // Predicated region
        $region29: #{tpu_custom_call.1} parent=11 // pred_check
          %p268 = pneg %p153
        $region30: #{tpu_custom_call.1} parent=11 // pred_check_branch
          %270 = sbr.rel (%p268) target = $region32
        $region31: #{tpu_custom_call.1} parent=11 // pred_region
          %s272 = ssub.s32 1024, 1024
          %273 = vsyncadd [#allocation9], %s272
          %s274 = sshll.u32 [#allocation8], 4
          %s275 = int_to_ptr.vmem [resolvable:$true] %s274
          %280 = dma.hbm_to_vmem [thread:$0]  %s5, 1024, %s275, [#allocation9], 64, 64, 4
        $region32: #{tpu_custom_call.1} parent=11 // pred_fallthru
          _
        // Predicated region
        $region33: #{tpu_custom_call.1} parent=11 // pred_check
          %p281 = pneg %p174
        $region34: #{tpu_custom_call.1} parent=11 // pred_check_branch
          %283 = sbr.rel (%p281) target = $region36
        $region35: #{tpu_custom_call.1} parent=11 // pred_region
          _
        $region36: #{tpu_custom_call.1} parent=11 // pred_fallthru
          _
        // Predicated region
        $region37: #{tpu_custom_call.1} parent=11 // pred_check
          %p284 = pneg %p195
        $region38: #{tpu_custom_call.1} parent=11 // pred_check_branch
          %286 = sbr.rel (%p284) target = $region40
        $region39: #{tpu_custom_call.1} parent=11 // pred_region
          %s288 = ssub.s32 1024, 1024
          %289 = vsyncadd [#allocation9], %s288
          %s290 = sshll.u32 [#allocation10], 4
          %s291 = int_to_ptr.vmem [resolvable:$true] %s290
          %296 = dma.hbm_to_vmem [thread:$0]  %s7, 1024, %s291, [#allocation9], 64, 64, 4
        $region40: #{tpu_custom_call.1} parent=11 // pred_fallthru
          _
      $region12: #{tpu_custom_call.1} parent=5 // pred_fallthru
        _
      %p297 = scmp.lt.s32.totalorder %s22, 2
      // Predicated region
      $region41: #{tpu_custom_call.1} parent=5 // pred_check
        %p298 = pneg %p297
      $region42: #{tpu_custom_call.1} parent=5 // pred_check_branch
        %300 = sbr.rel (%p298) target = $region44
      $region43: #{tpu_custom_call.1} parent=5 // pred_region
        // Predicated region
        $region45: #{tpu_custom_call.1} parent=43 // pred_check
          %p301 = pneg %p42
        $region46: #{tpu_custom_call.1} parent=43 // pred_check_branch
          %303 = sbr.rel (%p301) target = $region48
        $region47: #{tpu_custom_call.1} parent=43 // pred_region
          %s304 = sand.u32 %s32, 1
          %s305 = scalar_lea.sflag [#allocation3], %s304
          %s306 = sand.u32 %s32, 1
          %s307 = smul.addr %s306, 4
          %s308 = scalar_lea.vmem [#allocation2], %s307
          %s310 = ssub.s32 64, 64
          %311 = vsyncadd %s305, %s310
          %s312 = smul.addr %s22, 64
          %s313 = scalar_lea.hbm %s0, %s312
          %s315 = sshll.u32 %s308, 4
          %s316 = int_to_ptr.vmem [resolvable:$true] %s315
          %318 = dma.hbm_to_vmem [thread:$0]  %s313, 64, %s316, %s305
        $region48: #{tpu_custom_call.1} parent=43 // pred_fallthru
          _
      $region44: #{tpu_custom_call.1} parent=5 // pred_fallthru
        _
      %p319 = scmp.le.s32.totalorder 1, %s22
      %p320 = scmp.lt.s32.totalorder %s22, 3
      %p321 = pnand %p319, %p320
      %p322 = pneg %p321
      // Predicated region
      $region49: #{tpu_custom_call.1} parent=5 // pred_check
        _
      $region50: #{tpu_custom_call.1} parent=5 // pred_check_branch
        %324 = sbr.rel (%p321) target = $region52
      $region51: #{tpu_custom_call.1} parent=5 // pred_region
        %s325 = ssub.s32 %s22, 1
        %s326 = sand.u32 %s35, 1
        %s327 = scalar_lea.sflag [#allocation3], %s326
        %s328 = sand.u32 %s35, 1
        %s329 = smul.addr %s328, 4
        %s330 = scalar_lea.vmem [#allocation2], %s329
        // Predicated region
        $region53: #{tpu_custom_call.1} parent=51 // pred_check
          %p331 = pneg %p48
        $region54: #{tpu_custom_call.1} parent=51 // pred_check_branch
          %333 = sbr.rel (%p331) target = $region56
        $region55: #{tpu_custom_call.1} parent=51 // pred_region
          %334 = dma.done %s327, 64
        $region56: #{tpu_custom_call.1} parent=51 // pred_fallthru
          _
        // Predicated region
        $region57: #{tpu_custom_call.1} parent=51 // pred_check
          %p335 = pneg %p69
        $region58: #{tpu_custom_call.1} parent=51 // pred_check_branch
          %337 = sbr.rel (%p335) target = $region60
        $region59: #{tpu_custom_call.1} parent=51 // pred_region
          %338 = dma.done [#allocation6], 512
        $region60: #{tpu_custom_call.1} parent=51 // pred_fallthru
          _
        // Predicated region
        $region61: #{tpu_custom_call.1} parent=51 // pred_check
          %p339 = pneg %p111
        $region62: #{tpu_custom_call.1} parent=51 // pred_check_branch
          %341 = sbr.rel (%p339) target = $region64
        $region63: #{tpu_custom_call.1} parent=51 // pred_region
          %342 = dma.done [#allocation6], 1024
        $region64: #{tpu_custom_call.1} parent=51 // pred_fallthru
          _
        // Predicated region
        $region65: #{tpu_custom_call.1} parent=51 // pred_check
          %p343 = pneg %p153
        $region66: #{tpu_custom_call.1} parent=51 // pred_check_branch
          %345 = sbr.rel (%p343) target = $region68
        $region67: #{tpu_custom_call.1} parent=51 // pred_region
          %346 = dma.done [#allocation9], 1024
        $region68: #{tpu_custom_call.1} parent=51 // pred_fallthru
          _
        // Predicated region
        $region69: #{tpu_custom_call.1} parent=51 // pred_check
          %p347 = pneg %p195
        $region70: #{tpu_custom_call.1} parent=51 // pred_check_branch
          %349 = sbr.rel (%p347) target = $region72
        $region71: #{tpu_custom_call.1} parent=51 // pred_region
          %350 = dma.done [#allocation9], 1024
        $region72: #{tpu_custom_call.1} parent=51 // pred_fallthru
          _
        %s351 = sand.u32 %s35, 1
        %s352 = scalar_lea.sflag [#allocation3], %s351
        %s353 = sand.u32 %s35, 1
        %s354 = smul.addr %s353, 4
        %s355 = scalar_lea.vmem [#allocation2], %s354
        %p356 = pneg %p48
        %p357 = pneg %p45
        %p358 = pneg %p69
        %p359 = pneg %p66
        %p360 = pneg %p90
        %p361 = pneg %p87
        %p362 = pneg %p111
        %p363 = pneg %p108
        %p364 = pneg %p132
        %p365 = pneg %p129
        %p366 = pneg %p153
        %p367 = pneg %p150
        %p368 = pneg %p174
        %p369 = pneg %p171
        %p370 = pneg %p195
        %p371 = pneg %p192
        %p372 = pneg %p221
        %p373 = pneg %p218
        %s374 = sand.u32 %s208, 1
        %s375 = scalar_lea.sflag [#allocation4], %s374
        %s376 = sand.u32 %s208, 1
        %s377 = smul.addr %s376, 8
        %s378 = scalar_lea.vmem [#allocation11], %s377
        %v380 = vld [vmem:[%s330] sm:$0xf]
        %v381 = vld [vmem:[#allocation5] sm:$0xf]
        %v382 = vld [vmem:[#allocation5 + $0x4] sm:$0xf]
        %v383 = vld [vmem:[#allocation5 + $0x8] sm:$0xf]
        %v384 = vld [vmem:[#allocation5 + $0xc] sm:$0xf]
        %v385 = vld [vmem:[#allocation5 + $0x10] sm:$0xf]
        %v386 = vld [vmem:[#allocation5 + $0x14] sm:$0xf]
        %v387 = vld [vmem:[#allocation5 + $0x18] sm:$0xf]
        %v388 = vld [vmem:[#allocation5 + $0x1c] sm:$0xf]
        %v389 = vld [vmem:[%s2] sm:$0x1]
        %v391 = vlaneseq
        %v392 = vshrl.u32 %v391, 7
        %v393 = vsub.s32 0, %v392
        %v394 = vrot.slane %v389, %v393
        %v404 = vunpack.c.l.b16 %v381
        %v405 = vunpack.c.l.b16 %v382
        %v406 = vunpack.c.l.b16 %v383
        %v407 = vunpack.c.l.b16 %v384
        %v408 = vunpack.c.l.b16 %v385
        %v409 = vunpack.c.l.b16 %v386
        %v410 = vunpack.c.l.b16 %v387
        %v411 = vunpack.c.l.b16 %v388
        %v412 = vpack.c.b16 %v405, %v404
        %v413 = vpack.c.b16 %v407, %v406
        %v414 = vpack.c.b16 %v409, %v408
        %v415 = vpack.c.b16 %v411, %v410
        %vm420 = vcmask 523264
        %v422 = vsel %vm420, %v380, 0
        %424 = vmatprep.subr.bf16.mxu0 0
        %425 = vmatpush1.bf16.msra.mxu0 0
        %426 = vmatprep.subr.bf16.mxu0 0
        %427 = vmatpush1.bf16.msra.mxu0 0
        %428 = vmatprep.subr.bf16.mxu0 0
        %429 = vmatpush1.bf16.msra.mxu0 0
        %430 = vmatprep.subr.bf16.mxu0 0
        %431 = vmatpush1.bf16.msra.mxu0 0
        %432 = vmatprep.subr.bf16.mxu0 0
        %433 = vmatpush1.bf16.msra.mxu0 %v415
        %434 = vmatprep.subr.bf16.mxu0 0
        %435 = vmatpush1.bf16.msra.mxu0 %v414
        %436 = vmatprep.subr.bf16.mxu0 0
        %437 = vmatpush1.bf16.msra.mxu0 %v413
        %438 = vmatprep.subr.bf16.mxu0 0
        %439 = vmatpush1.bf16.msra.mxu0 %v412
        %440 = vmatprep.subr.bf16.mxu0 0
        %441 = vmatpush2.bf16.msra.mxu0 0
        %442 = vmatprep.subr.bf16.mxu0 0
        %443 = vmatpush2.bf16.msra.mxu0 0
        %444 = vmatprep.subr.bf16.mxu0 0
        %445 = vmatpush2.bf16.msra.mxu0 0
        %446 = vmatprep.subr.bf16.mxu0 0
        %447 = vmatpush2.bf16.msra.mxu0 0
        %448 = vmatprep.subr.bf16.mxu0 0
        %449 = vmatpush2.bf16.msra.mxu0 0
        %450 = vmatprep.subr.bf16.mxu0 0
        %451 = vmatpush2.bf16.msra.mxu0 0
        %452 = vmatprep.subr.bf16.mxu0 0
        %453 = vmatpush2.bf16.msra.mxu0 0
        %454 = vmatprep.subr.bf16.mxu0 0
        %455 = vmatpush2.bf16.msra.mxu0 0
        %456 = vmatprep.mubr.bf16.mxu0 0
        %457 = vmatmul.mubr.bf16.gmra.mxu0 %v422
        %v458 = vpop.f32.mrf.mxu0
        %v459 = vadd.f32 %v394, %v458
        %v460 = vpop.f32.mrf.mxu0
        %v461 = vpop.f32.mrf.mxu0
        %v462 = vpop.f32.mrf.mxu0
        %463 = vdwg.mxu0
        %v464 = vmax.f32 %v459, 0.0
        %v465 = vpack.c.bf16 %v464, %v464
        %v466 = vld [vmem:[#allocation7] sm:$0xf]
        %v467 = vld [vmem:[#allocation7 + $0x4] sm:$0xf]
        %v468 = vld [vmem:[#allocation7 + $0x8] sm:$0xf]
        %v469 = vld [vmem:[#allocation7 + $0xc] sm:$0xf]
        %v470 = vld [vmem:[#allocation7 + $0x10] sm:$0xf]
        %v471 = vld [vmem:[#allocation7 + $0x14] sm:$0xf]
        %v472 = vld [vmem:[#allocation7 + $0x18] sm:$0xf]
        %v473 = vld [vmem:[#allocation7 + $0x1c] sm:$0xf]
        %v474 = vld [vmem:[#allocation7 + $0x20] sm:$0xf]
        %v475 = vld [vmem:[#allocation7 + $0x24] sm:$0xf]
        %v476 = vld [vmem:[#allocation7 + $0x28] sm:$0xf]
        %v477 = vld [vmem:[#allocation7 + $0x2c] sm:$0xf]
        %v478 = vld [vmem:[#allocation7 + $0x30] sm:$0xf]
        %v479 = vld [vmem:[#allocation7 + $0x34] sm:$0xf]
        %v480 = vld [vmem:[#allocation7 + $0x38] sm:$0xf]
        %v481 = vld [vmem:[#allocation7 + $0x3c] sm:$0xf]
        %v482 = vld [vmem:[%s4] sm:$0x1]
        %v484 = vlaneseq
        %v485 = vshrl.u32 %v484, 7
        %v486 = vsub.s32 0, %v485
        %v487 = vrot.slane %v482, %v486
        %v505 = vunpack.c.l.b16 %v466
        %v506 = vunpack.c.l.b16 %v467
        %v507 = vunpack.c.l.b16 %v468
        %v508 = vunpack.c.l.b16 %v469
        %v509 = vunpack.c.l.b16 %v470
        %v510 = vunpack.c.l.b16 %v471
        %v511 = vunpack.c.l.b16 %v472
        %v512 = vunpack.c.l.b16 %v473
        %v513 = vunpack.c.l.b16 %v474
        %v514 = vunpack.c.l.b16 %v475
        %v515 = vunpack.c.l.b16 %v476
        %v516 = vunpack.c.l.b16 %v477
        %v517 = vunpack.c.l.b16 %v478
        %v518 = vunpack.c.l.b16 %v479
        %v519 = vunpack.c.l.b16 %v480
        %v520 = vunpack.c.l.b16 %v481
        %v521 = vpack.c.b16 %v506, %v505
        %v522 = vpack.c.b16 %v508, %v507
        %v523 = vpack.c.b16 %v510, %v509
        %v524 = vpack.c.b16 %v512, %v511
        %v525 = vpack.c.b16 %v514, %v513
        %v526 = vpack.c.b16 %v516, %v515
        %v527 = vpack.c.b16 %v518, %v517
        %v528 = vpack.c.b16 %v520, %v519
        %537 = vmatprep.subr.bf16.mxu0 0
        %538 = vmatpush1.bf16.msra.mxu0 %v528
        %539 = vmatprep.subr.bf16.mxu0 0
        %540 = vmatpush1.bf16.msra.mxu0 %v527
        %541 = vmatprep.subr.bf16.mxu0 0
        %542 = vmatpush1.bf16.msra.mxu0 %v526
        %543 = vmatprep.subr.bf16.mxu0 0
        %544 = vmatpush1.bf16.msra.mxu0 %v525
        %545 = vmatprep.subr.bf16.mxu0 0
        %546 = vmatpush1.bf16.msra.mxu0 %v524
        %547 = vmatprep.subr.bf16.mxu0 0
        %548 = vmatpush1.bf16.msra.mxu0 %v523
        %549 = vmatprep.subr.bf16.mxu0 0
        %550 = vmatpush1.bf16.msra.mxu0 %v522
        %551 = vmatprep.subr.bf16.mxu0 0
        %552 = vmatpush1.bf16.msra.mxu0 %v521
        %553 = vmatprep.subr.bf16.mxu0 0
        %554 = vmatpush2.bf16.msra.mxu0 0
        %555 = vmatprep.subr.bf16.mxu0 0
        %556 = vmatpush2.bf16.msra.mxu0 0
        %557 = vmatprep.subr.bf16.mxu0 0
        %558 = vmatpush2.bf16.msra.mxu0 0
        %559 = vmatprep.subr.bf16.mxu0 0
        %560 = vmatpush2.bf16.msra.mxu0 0
        %561 = vmatprep.subr.bf16.mxu0 0
        %562 = vmatpush2.bf16.msra.mxu0 0
        %563 = vmatprep.subr.bf16.mxu0 0
        %564 = vmatpush2.bf16.msra.mxu0 0
        %565 = vmatprep.subr.bf16.mxu0 0
        %566 = vmatpush2.bf16.msra.mxu0 0
        %567 = vmatprep.subr.bf16.mxu0 0
        %568 = vmatpush2.bf16.msra.mxu0 0
        %569 = vmatprep.mubr.bf16.mxu0 0
        %570 = vmatmul.mubr.bf16.gmra.mxu0 %v465
        %v571 = vpop.f32.mrf.mxu0
        %v572 = vadd.f32 %v487, %v571
        %v573 = vpop.f32.mrf.mxu0
        %v574 = vpop.f32.mrf.mxu0
        %v575 = vpop.f32.mrf.mxu0
        %576 = vdwg.mxu0
        %v577 = vmax.f32 %v572, 0.0
        %v578 = vpack.c.bf16 %v577, %v577
        %v579 = vld [vmem:[#allocation8] sm:$0xf]
        %v580 = vld [vmem:[#allocation8 + $0x4] sm:$0xf]
        %v581 = vld [vmem:[#allocation8 + $0x8] sm:$0xf]
        %v582 = vld [vmem:[#allocation8 + $0xc] sm:$0xf]
        %v583 = vld [vmem:[#allocation8 + $0x10] sm:$0xf]
        %v584 = vld [vmem:[#allocation8 + $0x14] sm:$0xf]
        %v585 = vld [vmem:[#allocation8 + $0x18] sm:$0xf]
        %v586 = vld [vmem:[#allocation8 + $0x1c] sm:$0xf]
        %v587 = vld [vmem:[#allocation8 + $0x20] sm:$0xf]
        %v588 = vld [vmem:[#allocation8 + $0x24] sm:$0xf]
        %v589 = vld [vmem:[#allocation8 + $0x28] sm:$0xf]
        %v590 = vld [vmem:[#allocation8 + $0x2c] sm:$0xf]
        %v591 = vld [vmem:[#allocation8 + $0x30] sm:$0xf]
        %v592 = vld [vmem:[#allocation8 + $0x34] sm:$0xf]
        %v593 = vld [vmem:[#allocation8 + $0x38] sm:$0xf]
        %v594 = vld [vmem:[#allocation8 + $0x3c] sm:$0xf]
        %v595 = vld [vmem:[%s6] sm:$0x1]
        %v597 = vlaneseq
        %v598 = vshrl.u32 %v597, 7
        %v599 = vsub.s32 0, %v598
        %v600 = vrot.slane %v595, %v599
        %v618 = vunpack.c.l.b16 %v579
        %v619 = vunpack.c.l.b16 %v580
        %v620 = vunpack.c.l.b16 %v581
        %v621 = vunpack.c.l.b16 %v582
        %v622 = vunpack.c.l.b16 %v583
        %v623 = vunpack.c.l.b16 %v584
        %v624 = vunpack.c.l.b16 %v585
        %v625 = vunpack.c.l.b16 %v586
        %v626 = vunpack.c.l.b16 %v587
        %v627 = vunpack.c.l.b16 %v588
        %v628 = vunpack.c.l.b16 %v589
        %v629 = vunpack.c.l.b16 %v590
        %v630 = vunpack.c.l.b16 %v591
        %v631 = vunpack.c.l.b16 %v592
        %v632 = vunpack.c.l.b16 %v593
        %v633 = vunpack.c.l.b16 %v594
        %v634 = vpack.c.b16 %v619, %v618
        %v635 = vpack.c.b16 %v621, %v620
        %v636 = vpack.c.b16 %v623, %v622
        %v637 = vpack.c.b16 %v625, %v624
        %v638 = vpack.c.b16 %v627, %v626
        %v639 = vpack.c.b16 %v629, %v628
        %v640 = vpack.c.b16 %v631, %v630
        %v641 = vpack.c.b16 %v633, %v632
        %650 = vmatprep.subr.bf16.mxu0 0
        %651 = vmatpush1.bf16.msra.mxu0 %v641
        %652 = vmatprep.subr.bf16.mxu0 0
        %653 = vmatpush1.bf16.msra.mxu0 %v640
        %654 = vmatprep.subr.bf16.mxu0 0
        %655 = vmatpush1.bf16.msra.mxu0 %v639
        %656 = vmatprep.subr.bf16.mxu0 0
        %657 = vmatpush1.bf16.msra.mxu0 %v638
        %658 = vmatprep.subr.bf16.mxu0 0
        %659 = vmatpush1.bf16.msra.mxu0 %v637
        %660 = vmatprep.subr.bf16.mxu0 0
        %661 = vmatpush1.bf16.msra.mxu0 %v636
        %662 = vmatprep.subr.bf16.mxu0 0
        %663 = vmatpush1.bf16.msra.mxu0 %v635
        %664 = vmatprep.subr.bf16.mxu0 0
        %665 = vmatpush1.bf16.msra.mxu0 %v634
        %666 = vmatprep.subr.bf16.mxu0 0
        %667 = vmatpush2.bf16.msra.mxu0 0
        %668 = vmatprep.subr.bf16.mxu0 0
        %669 = vmatpush2.bf16.msra.mxu0 0
        %670 = vmatprep.subr.bf16.mxu0 0
        %671 = vmatpush2.bf16.msra.mxu0 0
        %672 = vmatprep.subr.bf16.mxu0 0
        %673 = vmatpush2.bf16.msra.mxu0 0
        %674 = vmatprep.subr.bf16.mxu0 0
        %675 = vmatpush2.bf16.msra.mxu0 0
        %676 = vmatprep.subr.bf16.mxu0 0
        %677 = vmatpush2.bf16.msra.mxu0 0
        %678 = vmatprep.subr.bf16.mxu0 0
        %679 = vmatpush2.bf16.msra.mxu0 0
        %680 = vmatprep.subr.bf16.mxu0 0
        %681 = vmatpush2.bf16.msra.mxu0 0
        %682 = vmatprep.mubr.bf16.mxu0 0
        %683 = vmatmul.mubr.bf16.gmra.mxu0 %v578
        %v684 = vpop.f32.mrf.mxu0
        %v685 = vadd.f32 %v600, %v684
        %v686 = vpop.f32.mrf.mxu0
        %v687 = vpop.f32.mrf.mxu0
        %v688 = vpop.f32.mrf.mxu0
        %689 = vdwg.mxu0
        %v690 = vmax.f32 %v685, 0.0
        %v691 = vpack.c.bf16 %v690, %v690
        %v692 = vld [vmem:[#allocation10] sm:$0xf]
        %v693 = vld [vmem:[#allocation10 + $0x4] sm:$0xf]
        %v694 = vld [vmem:[#allocation10 + $0x8] sm:$0xf]
        %v695 = vld [vmem:[#allocation10 + $0xc] sm:$0xf]
        %v696 = vld [vmem:[#allocation10 + $0x10] sm:$0xf]
        %v697 = vld [vmem:[#allocation10 + $0x14] sm:$0xf]
        %v698 = vld [vmem:[#allocation10 + $0x18] sm:$0xf]
        %v699 = vld [vmem:[#allocation10 + $0x1c] sm:$0xf]
        %v700 = vld [vmem:[#allocation10 + $0x20] sm:$0xf]
        %v701 = vld [vmem:[#allocation10 + $0x24] sm:$0xf]
        %v702 = vld [vmem:[#allocation10 + $0x28] sm:$0xf]
        %v703 = vld [vmem:[#allocation10 + $0x2c] sm:$0xf]
        %v704 = vld [vmem:[#allocation10 + $0x30] sm:$0xf]
        %v705 = vld [vmem:[#allocation10 + $0x34] sm:$0xf]
        %v706 = vld [vmem:[#allocation10 + $0x38] sm:$0xf]
        %v707 = vld [vmem:[#allocation10 + $0x3c] sm:$0xf]
        %v724 = vunpack.c.l.b16 %v692
        %v725 = vunpack.c.l.b16 %v693
        %v726 = vunpack.c.l.b16 %v694
        %v727 = vunpack.c.l.b16 %v695
        %v728 = vunpack.c.l.b16 %v696
        %v729 = vunpack.c.l.b16 %v697
        %v730 = vunpack.c.l.b16 %v698
        %v731 = vunpack.c.l.b16 %v699
        %v732 = vunpack.c.l.b16 %v700
        %v733 = vunpack.c.l.b16 %v701
        %v734 = vunpack.c.l.b16 %v702
        %v735 = vunpack.c.l.b16 %v703
        %v736 = vunpack.c.l.b16 %v704
        %v737 = vunpack.c.l.b16 %v705
        %v738 = vunpack.c.l.b16 %v706
        %v739 = vunpack.c.l.b16 %v707
        %v740 = vpack.c.b16 %v725, %v724
        %v741 = vpack.c.b16 %v727, %v726
        %v742 = vpack.c.b16 %v729, %v728
        %v743 = vpack.c.b16 %v731, %v730
        %v744 = vpack.c.b16 %v733, %v732
        %v745 = vpack.c.b16 %v735, %v734
        %v746 = vpack.c.b16 %v737, %v736
        %v747 = vpack.c.b16 %v739, %v738
        %756 = vmatprep.subr.bf16.mxu0 0
        %757 = vmatpush1.bf16.msra.mxu0 %v747
        %758 = vmatprep.subr.bf16.mxu0 0
        %759 = vmatpush1.bf16.msra.mxu0 %v746
        %760 = vmatprep.subr.bf16.mxu0 0
        %761 = vmatpush1.bf16.msra.mxu0 %v745
        %762 = vmatprep.subr.bf16.mxu0 0
        %763 = vmatpush1.bf16.msra.mxu0 %v744
        %764 = vmatprep.subr.bf16.mxu0 0
        %765 = vmatpush1.bf16.msra.mxu0 %v743
        %766 = vmatprep.subr.bf16.mxu0 0
        %767 = vmatpush1.bf16.msra.mxu0 %v742
        %768 = vmatprep.subr.bf16.mxu0 0
        %769 = vmatpush1.bf16.msra.mxu0 %v741
        %770 = vmatprep.subr.bf16.mxu0 0
        %771 = vmatpush1.bf16.msra.mxu0 %v740
        %772 = vmatprep.subr.bf16.mxu0 0
        %773 = vmatpush2.bf16.msra.mxu0 0
        %774 = vmatprep.subr.bf16.mxu0 0
        %775 = vmatpush2.bf16.msra.mxu0 0
        %776 = vmatprep.subr.bf16.mxu0 0
        %777 = vmatpush2.bf16.msra.mxu0 0
        %778 = vmatprep.subr.bf16.mxu0 0
        %779 = vmatpush2.bf16.msra.mxu0 0
        %780 = vmatprep.subr.bf16.mxu0 0
        %781 = vmatpush2.bf16.msra.mxu0 0
        %782 = vmatprep.subr.bf16.mxu0 0
        %783 = vmatpush2.bf16.msra.mxu0 0
        %784 = vmatprep.subr.bf16.mxu0 0
        %785 = vmatpush2.bf16.msra.mxu0 0
        %786 = vmatprep.subr.bf16.mxu0 0
        %787 = vmatpush2.bf16.msra.mxu0 0
        %788 = vmatprep.mubr.bf16.mxu0 0
        %789 = vmatmul.mubr.bf16.gmra.mxu0 %v691
        %v790 = vpop.f32.mrf.mxu0
        %v791 = vadd.f32 0.0, %v790
        %v792 = vpop.f32.mrf.mxu0
        %v793 = vpop.f32.mrf.mxu0
        %v794 = vpop.f32.mrf.mxu0
        %795 = vdwg.mxu0
        %v796 = vmul.f32 %v791, %v791
        %797 = vadd.xlane.f32.xlu0 %v796
        %v798 = vpop.xlane.xlu0 %797
        %v799 = vadd.f32 %v798, 1e-12
        %v800 = vrsqrt.pop %v799
        %v801 = vmul.f32 %v791, %v800
        %802 = vst [vmem:[%s378] sm:$0xff] %v801
        %s803 = sand.u32 %s208, 1
        %s804 = scalar_lea.sflag [#allocation4], %s803
        %s805 = sand.u32 %s208, 1
        %s806 = smul.addr %s805, 8
        %s807 = scalar_lea.vmem [#allocation11], %s806
        // Predicated region
        $region73: #{tpu_custom_call.1} parent=51 // pred_check
          %p808 = pneg %p218
        $region74: #{tpu_custom_call.1} parent=51 // pred_check_branch
          %810 = sbr.rel (%p808) target = $region76
        $region75: #{tpu_custom_call.1} parent=51 // pred_region
          %s812 = ssub.s32 128, 128
          %813 = vsyncadd %s804, %s812
          %s814 = smul.addr %s27, 128
          %s815 = scalar_lea.hbm %s8, %s814
          %s817 = sshll.u32 %s807, 4
          %s818 = int_to_ptr.vmem [resolvable:$true] %s817
          %820 = dma.vmem_to_hbm [thread:$0]  %s818, 128, %s815, %s804
        $region76: #{tpu_custom_call.1} parent=51 // pred_fallthru
          _
      $region52: #{tpu_custom_call.1} parent=5 // pred_fallthru
        _
      %p821 = scmp.le.s32.totalorder 2, %s22
      // Predicated region
      $region77: #{tpu_custom_call.1} parent=5 // pred_check
        %p822 = pneg %p821
      $region78: #{tpu_custom_call.1} parent=5 // pred_check_branch
        %824 = sbr.rel (%p822) target = $region80
      $region79: #{tpu_custom_call.1} parent=5 // pred_region
        %s825 = ssub.s32 %s22, 2
        // Predicated region
        $region81: #{tpu_custom_call.1} parent=79 // pred_check
          %p826 = pneg %p224
        $region82: #{tpu_custom_call.1} parent=79 // pred_check_branch
          %828 = sbr.rel (%p826) target = $region84
        $region83: #{tpu_custom_call.1} parent=79 // pred_region
          %s829 = sand.u32 %s209, 1
          %s830 = scalar_lea.sflag [#allocation4], %s829
          %s831 = sand.u32 %s209, 1
          %s832 = smul.addr %s831, 8
          %s833 = scalar_lea.vmem [#allocation11], %s832
          %834 = dma.done %s830, 128
        $region84: #{tpu_custom_call.1} parent=79 // pred_fallthru
          _
      $region80: #{tpu_custom_call.1} parent=5 // pred_fallthru
        _
    $region6: #{tpu_custom_call.1} parent=1 // loop_footer
      %s26 = sadd.s32 1, %s22
    $region7: #{tpu_custom_call.1} parent=1 // loop_footer_branch
      %21 = sbr.rel target = $region3
    $region8: #{tpu_custom_call.1} parent=1 // loop_exit
      _
    %835 = vsyncpa [#allocation3], 1
    %s836 = scalar_lea.sflag [#allocation3], 1
    %837 = vsyncpa %s836, 1
    %838 = vsyncpa [#allocation6], 1
    %839 = vsyncpa [#allocation9], 1
    %840 = vsyncpa [#allocation4], 1
    %s841 = scalar_lea.sflag [#allocation4], 1
    %842 = vsyncpa %s841, 1

</llo_original>
